<compile_context>
chip_gen: v6e
topology: v6e:2x2x1
jax: 0.10.0
libtpu: 0.0.40
codegen_flags: <defaults>
</compile_context>

<pallas_src>
import functools

import jax
import jax.numpy as jnp
from jax import lax
from jax.experimental import pallas as pl
from jax.experimental.pallas import tpu as pltpu


# ----------------------------------------------------------------------------
# Kernel
# ----------------------------------------------------------------------------
def lstm_forward_kernel(x2d_ref,    # (T*Bp, D_in)  time-major, batch-padded input (f32)
                        emb_ref,    # (Bp, E)       gathered client embeddings (f32)
                        wproj_ref,  # (E, Hp)       client_proj weight, padded cols (f32)
                        bproj_ref,  # (1, Hp)       client_proj bias, padded (f32)
                        wih_ref,    # (D_in, 4*Hp)  fused LSTM input weights i,f,g,o (f32)
                        whh_ref,    # (Hp, 4*Hp)    fused LSTM hidden weights (bf16)
                        bg_ref,     # (1, 4*Hp)     fused gate bias b_ih + b_hh (f32)
                        wfc_ref,    # (1, Hp)       fc weight as a row, padded (f32)
                        bfc_ref,    # (1, 1)        fc bias (SMEM scalar)
                        out_ref,    # (Bp, 1)       sigmoid output
                        *, T, Bp, Hp, D_in, E):
    f32 = jnp.float32

    # ---- h_0 = client_proj(client_embed); c_0 = 0 ---------------------------
    # K = E is tiny: unrolled VPU broadcast-FMAs instead of a >90%-K-padded MXU
    # contraction.  Padded lanes of h_0 are exactly 0 (weights zero-padded).
    emb = emb_ref[...]                                     # (Bp, E)
    wproj = wproj_ref[...]                                 # (E, Hp)
    h = jnp.broadcast_to(bproj_ref[...], (Bp, Hp))
    for e in range(E):
        h = h + emb[:, e:e + 1] * wproj[e:e + 1, :]        # (Bp, Hp)
    c = jnp.zeros((Bp, Hp), f32)

    # Loop-invariant broadcasts hoisted out of the recurrence.
    bias_b = jnp.broadcast_to(bg_ref[...], (Bp, 4 * Hp))
    wih_rows = [jnp.broadcast_to(wih_ref[d:d + 1, :], (Bp, 4 * Hp))
                for d in range(D_in)]

    def step(t, carry):
        h, c = carry
        row = pl.multiple_of(t * Bp, 8)
        x_t = x2d_ref[pl.ds(row, Bp), :]                   # (Bp, D_in)

        # Input contribution: K = D_in (=2) -> VPU FMAs; keep the MXU for the
        # well-shaped recurrent matmul only.
        pre = bias_b
        for d in range(D_in):
            pre = pre + x_t[:, d:d + 1] * wih_rows[d]      # (Bp, 4*Hp)

        # Recurrent matmul: bf16 operands, f32 accumulate.  whh_ref is indexed
        # here (not hoisted) so Mosaic streams the RHS from VMEM per matmul
        # instead of holding it live in vregs across the unrolled loop.
        pre = pre + jnp.dot(h.astype(jnp.bfloat16), whh_ref[...],
                            preferred_element_type=f32)

        # Gate elementwise math in f32 (128-lane-aligned static slices).
        i_g = jax.nn.sigmoid(pre[:, 0 * Hp:1 * Hp])
        f_g = jax.nn.sigmoid(pre[:, 1 * Hp:2 * Hp])
        g_g = jnp.tanh(pre[:, 2 * Hp:3 * Hp])
        o_g = jax.nn.sigmoid(pre[:, 3 * Hp:4 * Hp])
        c_new = f_g * c + i_g * g_g
        h_new = o_g * jnp.tanh(c_new)
        return (h_new, c_new)

    # T is static and small: fully unroll so the LLO scheduler can interleave
    # MXU / EUP / VPU work across timesteps.
    h_last, _ = lax.fori_loop(0, T, step, (h, c), unroll=True)

    # fc(Hp -> 1): VPU multiply + lane reduce (avoids an N=1 MXU matmul).
    logits = (jnp.sum(h_last * wfc_ref[...], axis=-1, keepdims=True)
              + bfc_ref[0, 0])
    out_ref[...] = jax.nn.sigmoid(logits)


# ----------------------------------------------------------------------------
# Wrapper
# ----------------------------------------------------------------------------
@jax.jit
def lstm_model_forward(x, clients, packed):
    """x: (B, T, D_in) float32, clients: (B,) int32, packed: padded/fused params."""
    B, T, D_in = x.shape
    E, Hp = packed["w_proj"].shape
    Bp = ((B + 7) // 8) * 8                       # pad batch to full sublanes

    # Glue: embedding gather + batch-first -> time-major layout + batch padding.
    emb = jnp.take(packed["embedding"], clients, axis=0)          # (B, E)
    emb = jnp.pad(emb, ((0, Bp - B), (0, 0)))                     # (Bp, E)
    x_tm = jnp.transpose(x, (1, 0, 2))                            # (T, B, D_in)
    x_tm = jnp.pad(x_tm, ((0, 0), (0, Bp - B), (0, 0)))           # (T, Bp, D_in)
    x2d = x_tm.reshape(T * Bp, D_in)                              # (T*Bp, D_in)

    kernel = functools.partial(lstm_forward_kernel, T=T, Bp=Bp, Hp=Hp,
                               D_in=D_in, E=E)
    vmem = pl.BlockSpec(memory_space=pltpu.MemorySpace.VMEM)
    smem = pl.BlockSpec(memory_space=pltpu.MemorySpace.SMEM)

    weight_keys = ("w_proj", "b_proj", "w_ih", "w_hh", "b_gates", "w_fc", "b_fc")
    flops = (2 * T * Bp * D_in * 4 * Hp        # input FMAs (VPU)
             + 2 * T * Bp * Hp * 4 * Hp        # recurrent matmuls (MXU)
             + 2 * Bp * E * Hp                 # h_0 projection (VPU)
             + 2 * Bp * Hp)                    # fc reduce
    transcendentals = 5 * T * Bp * Hp + Bp
    bytes_accessed = (4 * (x2d.size + emb.size + Bp)
                      + sum(int(packed[k].size) * packed[k].dtype.itemsize
                            for k in weight_keys))

    out = pl.pallas_call(
        kernel,
        out_shape=jax.ShapeDtypeStruct((Bp, 1), jnp.float32),
        in_specs=[vmem, vmem, vmem, vmem, vmem, vmem, vmem, vmem, smem],
        out_specs=vmem,
        cost_estimate=pl.CostEstimate(flops=int(flops),
                                      transcendentals=int(transcendentals),
                                      bytes_accessed=int(bytes_accessed)),
    )(x2d, emb, packed["w_proj"], packed["b_proj"], packed["w_ih"],
      packed["w_hh"], packed["b_gates"], packed["w_fc"], packed["b_fc"])
    return out[:B]


# ----------------------------------------------------------------------------
# Parameters: logical (unpadded, fused-gate) init + hardware packing
# ----------------------------------------------------------------------------
def init_params(key, *, input_dim, hidden_dim, output_dim, num_clients, embedding_dim):
    """Logical params. LSTM weights fused along gate axis, PyTorch order i,f,g,o,
    stored input-major (in_features, out_features)."""
    ks = jax.random.split(key, 8)
    scale = 0.1
    H = hidden_dim
    return {
        "embedding": scale * jax.random.normal(ks[0], (num_clients, embedding_dim), jnp.float32),
        "w_proj":    scale * jax.random.normal(ks[1], (embedding_dim, H), jnp.float32),
        "b_proj":    scale * jax.random.normal(ks[2], (1, H), jnp.float32),
        "w_ih":      scale * jax.random.normal(ks[3], (input_dim, 4 * H), jnp.float32),
        "w_hh":      scale * jax.random.normal(ks[4], (H, 4 * H), jnp.float32),
        "b_gates":   scale * jax.random.normal(ks[5], (1, 4 * H), jnp.float32),   # b_ih + b_hh
        "w_fc":      scale * jax.random.normal(ks[6], (H, output_dim), jnp.float32),
        "b_fc":      scale * jax.random.normal(ks[7], (1, output_dim), jnp.float32),
    }


def pack_params(params, Hp=128):
    """Pad each gate's H columns to Hp (zero-padded, so padded lanes stay inert).
    The recurrent weight (MXU operand) is packed in bf16; everything else stays f32."""
    E, H = params["w_proj"].shape
    assert Hp >= H and Hp % 128 == 0

    def pad_gate_cols(a):
        n_blocks = a.shape[1] // H
        a = a.reshape(a.shape[0], n_blocks, H)
        a = jnp.pad(a, ((0, 0), (0, 0), (0, Hp - H)))
        return a.reshape(a.shape[0], n_blocks * Hp)

    w_hh_p = jnp.pad(pad_gate_cols(params["w_hh"]), ((0, Hp - H), (0, 0)))  # (Hp, 4Hp)
    return {
        "embedding": params["embedding"],
        "w_proj":  jnp.pad(params["w_proj"], ((0, 0), (0, Hp - H))),        # (E, Hp)
        "b_proj":  jnp.pad(params["b_proj"], ((0, 0), (0, Hp - H))),        # (1, Hp)
        "w_ih":    pad_gate_cols(params["w_ih"]),                           # (D_in, 4Hp)
        "w_hh":    w_hh_p.astype(jnp.bfloat16),                             # (Hp, 4Hp) bf16
        "b_gates": pad_gate_cols(params["b_gates"]),                        # (1, 4Hp)
        "w_fc":    jnp.pad(params["w_fc"].T, ((0, 0), (0, Hp - H))),        # (1, Hp)
        "b_fc":    params["b_fc"],                                          # (1, 1)
    }


# ----------------------------------------------------------------------------
# Pure-JAX reference (mirrors the PyTorch forward, logical f32 params)
# ----------------------------------------------------------------------------
def reference_forward(x, clients, params):
    H = params["w_proj"].shape[1]
    emb = jnp.take(params["embedding"], clients, axis=0)
    h = emb @ params["w_proj"] + params["b_proj"]
    c = jnp.zeros_like(h)
    T = x.shape[1]
    for t in range(T):
        x_t = x[:, t, :]
        pre = x_t @ params["w_ih"] + h @ params["w_hh"] + params["b_gates"]
        i_g = jax.nn.sigmoid(pre[:, 0 * H:1 * H])
        f_g = jax.nn.sigmoid(pre[:, 1 * H:2 * H])
        g_g = jnp.tanh(pre[:, 2 * H:3 * H])
        o_g = jax.nn.sigmoid(pre[:, 3 * H:4 * H])
        c = f_g * c + i_g * g_g
        h = o_g * jnp.tanh(c)
    return jax.nn.sigmoid(h @ params["w_fc"] + params["b_fc"])


if __name__ == "__main__":
    # Small shapes consistent with the module's __init__.
    input_dim = 2
    hidden_dim = 50
    output_dim = 1
    embedding_dim = 10
    num_clients = 4
    batch = 2
    seq = 8

    key = jax.random.PRNGKey(0)
    k_p, k_x, k_c = jax.random.split(key, 3)

    params = init_params(k_p,
                         input_dim=input_dim, hidden_dim=hidden_dim,
                         output_dim=output_dim, num_clients=num_clients,
                         embedding_dim=embedding_dim)
    packed = pack_params(params, Hp=128)

    x = jax.random.normal(k_x, (batch, seq, input_dim), jnp.float32)
    clients = jax.random.randint(k_c, (batch,), 0, num_clients, jnp.int32)

    out = lstm_model_forward(x, clients, packed)
    out = jax.block_until_ready(out)

    ref = reference_forward(x, clients, params)
    assert out.shape == (batch, output_dim), out.shape
    # bf16 recurrent weights => loosen tolerance vs. the f32 reference.
    assert jnp.allclose(out, ref, atol=1e-2, rtol=1e-2), (out, ref)

    print("KERNEL_OK")
</pallas_src>

<mosaic_0001>
module attributes {stable_mosaic.version = 11 : i64} {
  func.func @lstm_forward_kernel(%arg0: memref<64x2xf32, #tpu.memory_space<vmem>>, %arg1: memref<8x10xf32, #tpu.memory_space<vmem>>, %arg2: memref<10x128xf32, #tpu.memory_space<vmem>>, %arg3: memref<1x128xf32, #tpu.memory_space<vmem>>, %arg4: memref<2x512xf32, #tpu.memory_space<vmem>>, %arg5: memref<128x512xbf16, #tpu.memory_space<vmem>>, %arg6: memref<1x512xf32, #tpu.memory_space<vmem>>, %arg7: memref<1x128xf32, #tpu.memory_space<vmem>>, %arg8: memref<1x1xf32, #tpu.memory_space<smem>>, %arg9: memref<8x1xf32, #tpu.memory_space<vmem>>) attributes {dimension_semantics = [], scalar_prefetch = 0 : i64, scratch_operands = 0 : i64, tpu.core_type = #tpu.core_type<tc>} {
    %c0 = arith.constant 0 : index
    %c0_0 = arith.constant 0 : index
    %0 = vector.load %arg1[%c0, %c0_0] : memref<8x10xf32, #tpu.memory_space<vmem>>, vector<8x10xf32>
    %c0_1 = arith.constant 0 : index
    %c0_2 = arith.constant 0 : index
    %1 = vector.load %arg2[%c0_1, %c0_2] : memref<10x128xf32, #tpu.memory_space<vmem>>, vector<10x128xf32>
    %c0_3 = arith.constant 0 : index
    %c0_4 = arith.constant 0 : index
    %2 = vector.load %arg3[%c0_3, %c0_4] : memref<1x128xf32, #tpu.memory_space<vmem>>, vector<1x128xf32>
    %3 = vector.shape_cast %2 : vector<1x128xf32> to vector<1x128xf32>
    %4 = vector.broadcast %3 : vector<1x128xf32> to vector<8x128xf32>
    %5 = vector.extract_strided_slice %0 {offsets = [0, 0], sizes = [8, 1], strides = [1, 1]} : vector<8x10xf32> to vector<8x1xf32>
    %6 = vector.extract_strided_slice %1 {offsets = [0, 0], sizes = [1, 128], strides = [1, 1]} : vector<10x128xf32> to vector<1x128xf32>
    %7 = vector.broadcast %5 : vector<8x1xf32> to vector<8x128xf32>
    %8 = vector.broadcast %6 : vector<1x128xf32> to vector<8x128xf32>
    %9 = arith.mulf %7, %8 : vector<8x128xf32>
    %10 = arith.addf %4, %9 : vector<8x128xf32>
    %11 = vector.extract_strided_slice %0 {offsets = [0, 1], sizes = [8, 1], strides = [1, 1]} : vector<8x10xf32> to vector<8x1xf32>
    %12 = vector.extract_strided_slice %1 {offsets = [1, 0], sizes = [1, 128], strides = [1, 1]} : vector<10x128xf32> to vector<1x128xf32>
    %13 = vector.broadcast %11 : vector<8x1xf32> to vector<8x128xf32>
    %14 = vector.broadcast %12 : vector<1x128xf32> to vector<8x128xf32>
    %15 = arith.mulf %13, %14 : vector<8x128xf32>
    %16 = arith.addf %10, %15 : vector<8x128xf32>
    %17 = vector.extract_strided_slice %0 {offsets = [0, 2], sizes = [8, 1], strides = [1, 1]} : vector<8x10xf32> to vector<8x1xf32>
    %18 = vector.extract_strided_slice %1 {offsets = [2, 0], sizes = [1, 128], strides = [1, 1]} : vector<10x128xf32> to vector<1x128xf32>
    %19 = vector.broadcast %17 : vector<8x1xf32> to vector<8x128xf32>
    %20 = vector.broadcast %18 : vector<1x128xf32> to vector<8x128xf32>
    %21 = arith.mulf %19, %20 : vector<8x128xf32>
    %22 = arith.addf %16, %21 : vector<8x128xf32>
    %23 = vector.extract_strided_slice %0 {offsets = [0, 3], sizes = [8, 1], strides = [1, 1]} : vector<8x10xf32> to vector<8x1xf32>
    %24 = vector.extract_strided_slice %1 {offsets = [3, 0], sizes = [1, 128], strides = [1, 1]} : vector<10x128xf32> to vector<1x128xf32>
    %25 = vector.broadcast %23 : vector<8x1xf32> to vector<8x128xf32>
    %26 = vector.broadcast %24 : vector<1x128xf32> to vector<8x128xf32>
    %27 = arith.mulf %25, %26 : vector<8x128xf32>
    %28 = arith.addf %22, %27 : vector<8x128xf32>
    %29 = vector.extract_strided_slice %0 {offsets = [0, 4], sizes = [8, 1], strides = [1, 1]} : vector<8x10xf32> to vector<8x1xf32>
    %30 = vector.extract_strided_slice %1 {offsets = [4, 0], sizes = [1, 128], strides = [1, 1]} : vector<10x128xf32> to vector<1x128xf32>
    %31 = vector.broadcast %29 : vector<8x1xf32> to vector<8x128xf32>
    %32 = vector.broadcast %30 : vector<1x128xf32> to vector<8x128xf32>
    %33 = arith.mulf %31, %32 : vector<8x128xf32>
    %34 = arith.addf %28, %33 : vector<8x128xf32>
    %35 = vector.extract_strided_slice %0 {offsets = [0, 5], sizes = [8, 1], strides = [1, 1]} : vector<8x10xf32> to vector<8x1xf32>
    %36 = vector.extract_strided_slice %1 {offsets = [5, 0], sizes = [1, 128], strides = [1, 1]} : vector<10x128xf32> to vector<1x128xf32>
    %37 = vector.broadcast %35 : vector<8x1xf32> to vector<8x128xf32>
    %38 = vector.broadcast %36 : vector<1x128xf32> to vector<8x128xf32>
    %39 = arith.mulf %37, %38 : vector<8x128xf32>
    %40 = arith.addf %34, %39 : vector<8x128xf32>
    %41 = vector.extract_strided_slice %0 {offsets = [0, 6], sizes = [8, 1], strides = [1, 1]} : vector<8x10xf32> to vector<8x1xf32>
    %42 = vector.extract_strided_slice %1 {offsets = [6, 0], sizes = [1, 128], strides = [1, 1]} : vector<10x128xf32> to vector<1x128xf32>
    %43 = vector.broadcast %41 : vector<8x1xf32> to vector<8x128xf32>
    %44 = vector.broadcast %42 : vector<1x128xf32> to vector<8x128xf32>
    %45 = arith.mulf %43, %44 : vector<8x128xf32>
    %46 = arith.addf %40, %45 : vector<8x128xf32>
    %47 = vector.extract_strided_slice %0 {offsets = [0, 7], sizes = [8, 1], strides = [1, 1]} : vector<8x10xf32> to vector<8x1xf32>
    %48 = vector.extract_strided_slice %1 {offsets = [7, 0], sizes = [1, 128], strides = [1, 1]} : vector<10x128xf32> to vector<1x128xf32>
    %49 = vector.broadcast %47 : vector<8x1xf32> to vector<8x128xf32>
    %50 = vector.broadcast %48 : vector<1x128xf32> to vector<8x128xf32>
    %51 = arith.mulf %49, %50 : vector<8x128xf32>
    %52 = arith.addf %46, %51 : vector<8x128xf32>
    %53 = vector.extract_strided_slice %0 {offsets = [0, 8], sizes = [8, 1], strides = [1, 1]} : vector<8x10xf32> to vector<8x1xf32>
    %54 = vector.extract_strided_slice %1 {offsets = [8, 0], sizes = [1, 128], strides = [1, 1]} : vector<10x128xf32> to vector<1x128xf32>
    %55 = vector.broadcast %53 : vector<8x1xf32> to vector<8x128xf32>
    %56 = vector.broadcast %54 : vector<1x128xf32> to vector<8x128xf32>
    %57 = arith.mulf %55, %56 : vector<8x128xf32>
    %58 = arith.addf %52, %57 : vector<8x128xf32>
    %59 = vector.extract_strided_slice %0 {offsets = [0, 9], sizes = [8, 1], strides = [1, 1]} : vector<8x10xf32> to vector<8x1xf32>
    %60 = vector.extract_strided_slice %1 {offsets = [9, 0], sizes = [1, 128], strides = [1, 1]} : vector<10x128xf32> to vector<1x128xf32>
    %61 = vector.broadcast %59 : vector<8x1xf32> to vector<8x128xf32>
    %62 = vector.broadcast %60 : vector<1x128xf32> to vector<8x128xf32>
    %63 = arith.mulf %61, %62 : vector<8x128xf32>
    %64 = arith.addf %58, %63 : vector<8x128xf32>
    %cst = arith.constant 0.000000e+00 : f32
    %65 = vector.broadcast %cst : f32 to vector<8x128xf32>
    %c0_5 = arith.constant 0 : index
    %c0_6 = arith.constant 0 : index
    %66 = vector.load %arg6[%c0_5, %c0_6] : memref<1x512xf32, #tpu.memory_space<vmem>>, vector<1x512xf32>
    %67 = vector.shape_cast %66 : vector<1x512xf32> to vector<1x512xf32>
    %68 = vector.broadcast %67 : vector<1x512xf32> to vector<8x512xf32>
    %c0_7 = arith.constant 0 : index
    %c0_8 = arith.constant 0 : index
    %69 = vector.load %arg4[%c0_7, %c0_8] : memref<2x512xf32, #tpu.memory_space<vmem>>, vector<1x512xf32>
    %70 = vector.shape_cast %69 : vector<1x512xf32> to vector<1x512xf32>
    %71 = vector.broadcast %70 : vector<1x512xf32> to vector<8x512xf32>
    %c1 = arith.constant 1 : index
    %c0_9 = arith.constant 0 : index
    %72 = vector.load %arg4[%c1, %c0_9] : memref<2x512xf32, #tpu.memory_space<vmem>>, vector<1x512xf32>
    %73 = vector.shape_cast %72 : vector<1x512xf32> to vector<1x512xf32>
    %74 = vector.broadcast %73 : vector<1x512xf32> to vector<8x512xf32>
    %c0_i32 = arith.constant 0 : i32
    %c8_i32 = arith.constant 8 : i32
    %75 = arith.muli %c0_i32, %c8_i32 : i32
    %76 = tpu.assume_multiple %75, 8 : i32
    %77 = arith.index_cast %76 : i32 to index
    %c0_10 = arith.constant 0 : index
    %78 = vector.load %arg0[%77, %c0_10] : memref<64x2xf32, #tpu.memory_space<vmem>>, vector<8x2xf32>
    %79 = vector.extract_strided_slice %78 {offsets = [0, 0], sizes = [8, 1], strides = [1, 1]} : vector<8x2xf32> to vector<8x1xf32>
    %80 = vector.broadcast %79 : vector<8x1xf32> to vector<8x512xf32>
    %81 = arith.mulf %80, %71 : vector<8x512xf32>
    %82 = arith.addf %68, %81 : vector<8x512xf32>
    %83 = vector.extract_strided_slice %78 {offsets = [0, 1], sizes = [8, 1], strides = [1, 1]} : vector<8x2xf32> to vector<8x1xf32>
    %84 = vector.broadcast %83 : vector<8x1xf32> to vector<8x512xf32>
    %85 = arith.mulf %84, %74 : vector<8x512xf32>
    %86 = arith.addf %82, %85 : vector<8x512xf32>
    %87 = arith.truncf %64 : vector<8x128xf32> to vector<8x128xbf16>
    %c0_11 = arith.constant 0 : index
    %c0_12 = arith.constant 0 : index
    %88 = vector.load %arg5[%c0_11, %c0_12] : memref<128x512xbf16, #tpu.memory_space<vmem>>, vector<128x512xbf16>
    %cst_13 = arith.constant dense<0.000000e+00> : vector<8x512xf32>
    %89 = tpu.matmul %87, %88, %cst_13 {dimension_numbers = #tpu.dot_dimension_numbers<[1], [0], [0], [1], [0, 0, 1, 1], [], []>} : vector<8x128xbf16>, vector<128x512xbf16>, vector<8x512xf32> -> vector<8x512xf32>
    %90 = arith.addf %86, %89 : vector<8x512xf32>
    %91 = vector.extract_strided_slice %90 {offsets = [0, 0], sizes = [8, 128], strides = [1, 1]} : vector<8x512xf32> to vector<8x128xf32>
    %92 = arith.negf %91 : vector<8x128xf32>
    %93 = math.exp %92 : vector<8x128xf32>
    %cst_14 = arith.constant 1.000000e+00 : f32
    %94 = vector.broadcast %cst_14 : f32 to vector<8x128xf32>
    %95 = arith.addf %94, %93 : vector<8x128xf32>
    %96 = arith.divf %94, %95 : vector<8x128xf32>
    %97 = vector.extract_strided_slice %90 {offsets = [0, 128], sizes = [8, 128], strides = [1, 1]} : vector<8x512xf32> to vector<8x128xf32>
    %98 = arith.negf %97 : vector<8x128xf32>
    %99 = math.exp %98 : vector<8x128xf32>
    %cst_15 = arith.constant 1.000000e+00 : f32
    %100 = vector.broadcast %cst_15 : f32 to vector<8x128xf32>
    %101 = arith.addf %100, %99 : vector<8x128xf32>
    %102 = arith.divf %100, %101 : vector<8x128xf32>
    %103 = vector.extract_strided_slice %90 {offsets = [0, 256], sizes = [8, 128], strides = [1, 1]} : vector<8x512xf32> to vector<8x128xf32>
    %104 = math.tanh %103 : vector<8x128xf32>
    %105 = vector.extract_strided_slice %90 {offsets = [0, 384], sizes = [8, 128], strides = [1, 1]} : vector<8x512xf32> to vector<8x128xf32>
    %106 = arith.negf %105 : vector<8x128xf32>
    %107 = math.exp %106 : vector<8x128xf32>
    %cst_16 = arith.constant 1.000000e+00 : f32
    %108 = vector.broadcast %cst_16 : f32 to vector<8x128xf32>
    %109 = arith.addf %108, %107 : vector<8x128xf32>
    %110 = arith.divf %108, %109 : vector<8x128xf32>
    %111 = arith.mulf %102, %65 : vector<8x128xf32>
    %112 = arith.mulf %96, %104 : vector<8x128xf32>
    %113 = arith.addf %111, %112 : vector<8x128xf32>
    %114 = math.tanh %113 : vector<8x128xf32>
    %115 = arith.mulf %110, %114 : vector<8x128xf32>
    %c1_i32 = arith.constant 1 : i32
    %c8_i32_17 = arith.constant 8 : i32
    %116 = arith.muli %c1_i32, %c8_i32_17 : i32
    %117 = tpu.assume_multiple %116, 8 : i32
    %118 = arith.index_cast %117 : i32 to index
    %c0_18 = arith.constant 0 : index
    %119 = vector.load %arg0[%118, %c0_18] : memref<64x2xf32, #tpu.memory_space<vmem>>, vector<8x2xf32>
    %120 = vector.extract_strided_slice %119 {offsets = [0, 0], sizes = [8, 1], strides = [1, 1]} : vector<8x2xf32> to vector<8x1xf32>
    %121 = vector.broadcast %120 : vector<8x1xf32> to vector<8x512xf32>
    %122 = arith.mulf %121, %71 : vector<8x512xf32>
    %123 = arith.addf %68, %122 : vector<8x512xf32>
    %124 = vector.extract_strided_slice %119 {offsets = [0, 1], sizes = [8, 1], strides = [1, 1]} : vector<8x2xf32> to vector<8x1xf32>
    %125 = vector.broadcast %124 : vector<8x1xf32> to vector<8x512xf32>
    %126 = arith.mulf %125, %74 : vector<8x512xf32>
    %127 = arith.addf %123, %126 : vector<8x512xf32>
    %128 = arith.truncf %115 : vector<8x128xf32> to vector<8x128xbf16>
    %c0_19 = arith.constant 0 : index
    %c0_20 = arith.constant 0 : index
    %129 = vector.load %arg5[%c0_19, %c0_20] : memref<128x512xbf16, #tpu.memory_space<vmem>>, vector<128x512xbf16>
    %cst_21 = arith.constant dense<0.000000e+00> : vector<8x512xf32>
    %130 = tpu.matmul %128, %129, %cst_21 {dimension_numbers = #tpu.dot_dimension_numbers<[1], [0], [0], [1], [0, 0, 1, 1], [], []>} : vector<8x128xbf16>, vector<128x512xbf16>, vector<8x512xf32> -> vector<8x512xf32>
    %131 = arith.addf %127, %130 : vector<8x512xf32>
    %132 = vector.extract_strided_slice %131 {offsets = [0, 0], sizes = [8, 128], strides = [1, 1]} : vector<8x512xf32> to vector<8x128xf32>
    %133 = arith.negf %132 : vector<8x128xf32>
    %134 = math.exp %133 : vector<8x128xf32>
    %cst_22 = arith.constant 1.000000e+00 : f32
    %135 = vector.broadcast %cst_22 : f32 to vector<8x128xf32>
    %136 = arith.addf %135, %134 : vector<8x128xf32>
    %137 = arith.divf %135, %136 : vector<8x128xf32>
    %138 = vector.extract_strided_slice %131 {offsets = [0, 128], sizes = [8, 128], strides = [1, 1]} : vector<8x512xf32> to vector<8x128xf32>
    %139 = arith.negf %138 : vector<8x128xf32>
    %140 = math.exp %139 : vector<8x128xf32>
    %cst_23 = arith.constant 1.000000e+00 : f32
    %141 = vector.broadcast %cst_23 : f32 to vector<8x128xf32>
    %142 = arith.addf %141, %140 : vector<8x128xf32>
    %143 = arith.divf %141, %142 : vector<8x128xf32>
    %144 = vector.extract_strided_slice %131 {offsets = [0, 256], sizes = [8, 128], strides = [1, 1]} : vector<8x512xf32> to vector<8x128xf32>
    %145 = math.tanh %144 : vector<8x128xf32>
    %146 = vector.extract_strided_slice %131 {offsets = [0, 384], sizes = [8, 128], strides = [1, 1]} : vector<8x512xf32> to vector<8x128xf32>
    %147 = arith.negf %146 : vector<8x128xf32>
    %148 = math.exp %147 : vector<8x128xf32>
    %cst_24 = arith.constant 1.000000e+00 : f32
    %149 = vector.broadcast %cst_24 : f32 to vector<8x128xf32>
    %150 = arith.addf %149, %148 : vector<8x128xf32>
    %151 = arith.divf %149, %150 : vector<8x128xf32>
    %152 = arith.mulf %143, %113 : vector<8x128xf32>
    %153 = arith.mulf %137, %145 : vector<8x128xf32>
    %154 = arith.addf %152, %153 : vector<8x128xf32>
    %155 = math.tanh %154 : vector<8x128xf32>
    %156 = arith.mulf %151, %155 : vector<8x128xf32>
    %c2_i32 = arith.constant 2 : i32
    %c8_i32_25 = arith.constant 8 : i32
    %157 = arith.muli %c2_i32, %c8_i32_25 : i32
    %158 = tpu.assume_multiple %157, 8 : i32
    %159 = arith.index_cast %158 : i32 to index
    %c0_26 = arith.constant 0 : index
    %160 = vector.load %arg0[%159, %c0_26] : memref<64x2xf32, #tpu.memory_space<vmem>>, vector<8x2xf32>
    %161 = vector.extract_strided_slice %160 {offsets = [0, 0], sizes = [8, 1], strides = [1, 1]} : vector<8x2xf32> to vector<8x1xf32>
    %162 = vector.broadcast %161 : vector<8x1xf32> to vector<8x512xf32>
    %163 = arith.mulf %162, %71 : vector<8x512xf32>
    %164 = arith.addf %68, %163 : vector<8x512xf32>
    %165 = vector.extract_strided_slice %160 {offsets = [0, 1], sizes = [8, 1], strides = [1, 1]} : vector<8x2xf32> to vector<8x1xf32>
    %166 = vector.broadcast %165 : vector<8x1xf32> to vector<8x512xf32>
    %167 = arith.mulf %166, %74 : vector<8x512xf32>
    %168 = arith.addf %164, %167 : vector<8x512xf32>
    %169 = arith.truncf %156 : vector<8x128xf32> to vector<8x128xbf16>
    %c0_27 = arith.constant 0 : index
    %c0_28 = arith.constant 0 : index
    %170 = vector.load %arg5[%c0_27, %c0_28] : memref<128x512xbf16, #tpu.memory_space<vmem>>, vector<128x512xbf16>
    %cst_29 = arith.constant dense<0.000000e+00> : vector<8x512xf32>
    %171 = tpu.matmul %169, %170, %cst_29 {dimension_numbers = #tpu.dot_dimension_numbers<[1], [0], [0], [1], [0, 0, 1, 1], [], []>} : vector<8x128xbf16>, vector<128x512xbf16>, vector<8x512xf32> -> vector<8x512xf32>
    %172 = arith.addf %168, %171 : vector<8x512xf32>
    %173 = vector.extract_strided_slice %172 {offsets = [0, 0], sizes = [8, 128], strides = [1, 1]} : vector<8x512xf32> to vector<8x128xf32>
    %174 = arith.negf %173 : vector<8x128xf32>
    %175 = math.exp %174 : vector<8x128xf32>
    %cst_30 = arith.constant 1.000000e+00 : f32
    %176 = vector.broadcast %cst_30 : f32 to vector<8x128xf32>
    %177 = arith.addf %176, %175 : vector<8x128xf32>
    %178 = arith.divf %176, %177 : vector<8x128xf32>
    %179 = vector.extract_strided_slice %172 {offsets = [0, 128], sizes = [8, 128], strides = [1, 1]} : vector<8x512xf32> to vector<8x128xf32>
    %180 = arith.negf %179 : vector<8x128xf32>
    %181 = math.exp %180 : vector<8x128xf32>
    %cst_31 = arith.constant 1.000000e+00 : f32
    %182 = vector.broadcast %cst_31 : f32 to vector<8x128xf32>
    %183 = arith.addf %182, %181 : vector<8x128xf32>
    %184 = arith.divf %182, %183 : vector<8x128xf32>
    %185 = vector.extract_strided_slice %172 {offsets = [0, 256], sizes = [8, 128], strides = [1, 1]} : vector<8x512xf32> to vector<8x128xf32>
    %186 = math.tanh %185 : vector<8x128xf32>
    %187 = vector.extract_strided_slice %172 {offsets = [0, 384], sizes = [8, 128], strides = [1, 1]} : vector<8x512xf32> to vector<8x128xf32>
    %188 = arith.negf %187 : vector<8x128xf32>
    %189 = math.exp %188 : vector<8x128xf32>
    %cst_32 = arith.constant 1.000000e+00 : f32
    %190 = vector.broadcast %cst_32 : f32 to vector<8x128xf32>
    %191 = arith.addf %190, %189 : vector<8x128xf32>
    %192 = arith.divf %190, %191 : vector<8x128xf32>
    %193 = arith.mulf %184, %154 : vector<8x128xf32>
    %194 = arith.mulf %178, %186 : vector<8x128xf32>
    %195 = arith.addf %193, %194 : vector<8x128xf32>
    %196 = math.tanh %195 : vector<8x128xf32>
    %197 = arith.mulf %192, %196 : vector<8x128xf32>
    %c3_i32 = arith.constant 3 : i32
    %c8_i32_33 = arith.constant 8 : i32
    %198 = arith.muli %c3_i32, %c8_i32_33 : i32
    %199 = tpu.assume_multiple %198, 8 : i32
    %200 = arith.index_cast %199 : i32 to index
    %c0_34 = arith.constant 0 : index
    %201 = vector.load %arg0[%200, %c0_34] : memref<64x2xf32, #tpu.memory_space<vmem>>, vector<8x2xf32>
    %202 = vector.extract_strided_slice %201 {offsets = [0, 0], sizes = [8, 1], strides = [1, 1]} : vector<8x2xf32> to vector<8x1xf32>
    %203 = vector.broadcast %202 : vector<8x1xf32> to vector<8x512xf32>
    %204 = arith.mulf %203, %71 : vector<8x512xf32>
    %205 = arith.addf %68, %204 : vector<8x512xf32>
    %206 = vector.extract_strided_slice %201 {offsets = [0, 1], sizes = [8, 1], strides = [1, 1]} : vector<8x2xf32> to vector<8x1xf32>
    %207 = vector.broadcast %206 : vector<8x1xf32> to vector<8x512xf32>
    %208 = arith.mulf %207, %74 : vector<8x512xf32>
    %209 = arith.addf %205, %208 : vector<8x512xf32>
    %210 = arith.truncf %197 : vector<8x128xf32> to vector<8x128xbf16>
    %c0_35 = arith.constant 0 : index
    %c0_36 = arith.constant 0 : index
    %211 = vector.load %arg5[%c0_35, %c0_36] : memref<128x512xbf16, #tpu.memory_space<vmem>>, vector<128x512xbf16>
    %cst_37 = arith.constant dense<0.000000e+00> : vector<8x512xf32>
    %212 = tpu.matmul %210, %211, %cst_37 {dimension_numbers = #tpu.dot_dimension_numbers<[1], [0], [0], [1], [0, 0, 1, 1], [], []>} : vector<8x128xbf16>, vector<128x512xbf16>, vector<8x512xf32> -> vector<8x512xf32>
    %213 = arith.addf %209, %212 : vector<8x512xf32>
    %214 = vector.extract_strided_slice %213 {offsets = [0, 0], sizes = [8, 128], strides = [1, 1]} : vector<8x512xf32> to vector<8x128xf32>
    %215 = arith.negf %214 : vector<8x128xf32>
    %216 = math.exp %215 : vector<8x128xf32>
    %cst_38 = arith.constant 1.000000e+00 : f32
    %217 = vector.broadcast %cst_38 : f32 to vector<8x128xf32>
    %218 = arith.addf %217, %216 : vector<8x128xf32>
    %219 = arith.divf %217, %218 : vector<8x128xf32>
    %220 = vector.extract_strided_slice %213 {offsets = [0, 128], sizes = [8, 128], strides = [1, 1]} : vector<8x512xf32> to vector<8x128xf32>
    %221 = arith.negf %220 : vector<8x128xf32>
    %222 = math.exp %221 : vector<8x128xf32>
    %cst_39 = arith.constant 1.000000e+00 : f32
    %223 = vector.broadcast %cst_39 : f32 to vector<8x128xf32>
    %224 = arith.addf %223, %222 : vector<8x128xf32>
    %225 = arith.divf %223, %224 : vector<8x128xf32>
    %226 = vector.extract_strided_slice %213 {offsets = [0, 256], sizes = [8, 128], strides = [1, 1]} : vector<8x512xf32> to vector<8x128xf32>
    %227 = math.tanh %226 : vector<8x128xf32>
    %228 = vector.extract_strided_slice %213 {offsets = [0, 384], sizes = [8, 128], strides = [1, 1]} : vector<8x512xf32> to vector<8x128xf32>
    %229 = arith.negf %228 : vector<8x128xf32>
    %230 = math.exp %229 : vector<8x128xf32>
    %cst_40 = arith.constant 1.000000e+00 : f32
    %231 = vector.broadcast %cst_40 : f32 to vector<8x128xf32>
    %232 = arith.addf %231, %230 : vector<8x128xf32>
    %233 = arith.divf %231, %232 : vector<8x128xf32>
    %234 = arith.mulf %225, %195 : vector<8x128xf32>
    %235 = arith.mulf %219, %227 : vector<8x128xf32>
    %236 = arith.addf %234, %235 : vector<8x128xf32>
    %237 = math.tanh %236 : vector<8x128xf32>
    %238 = arith.mulf %233, %237 : vector<8x128xf32>
    %c4_i32 = arith.constant 4 : i32
    %c8_i32_41 = arith.constant 8 : i32
    %239 = arith.muli %c4_i32, %c8_i32_41 : i32
    %240 = tpu.assume_multiple %239, 8 : i32
    %241 = arith.index_cast %240 : i32 to index
    %c0_42 = arith.constant 0 : index
    %242 = vector.load %arg0[%241, %c0_42] : memref<64x2xf32, #tpu.memory_space<vmem>>, vector<8x2xf32>
    %243 = vector.extract_strided_slice %242 {offsets = [0, 0], sizes = [8, 1], strides = [1, 1]} : vector<8x2xf32> to vector<8x1xf32>
    %244 = vector.broadcast %243 : vector<8x1xf32> to vector<8x512xf32>
    %245 = arith.mulf %244, %71 : vector<8x512xf32>
    %246 = arith.addf %68, %245 : vector<8x512xf32>
    %247 = vector.extract_strided_slice %242 {offsets = [0, 1], sizes = [8, 1], strides = [1, 1]} : vector<8x2xf32> to vector<8x1xf32>
    %248 = vector.broadcast %247 : vector<8x1xf32> to vector<8x512xf32>
    %249 = arith.mulf %248, %74 : vector<8x512xf32>
    %250 = arith.addf %246, %249 : vector<8x512xf32>
    %251 = arith.truncf %238 : vector<8x128xf32> to vector<8x128xbf16>
    %c0_43 = arith.constant 0 : index
    %c0_44 = arith.constant 0 : index
    %252 = vector.load %arg5[%c0_43, %c0_44] : memref<128x512xbf16, #tpu.memory_space<vmem>>, vector<128x512xbf16>
    %cst_45 = arith.constant dense<0.000000e+00> : vector<8x512xf32>
    %253 = tpu.matmul %251, %252, %cst_45 {dimension_numbers = #tpu.dot_dimension_numbers<[1], [0], [0], [1], [0, 0, 1, 1], [], []>} : vector<8x128xbf16>, vector<128x512xbf16>, vector<8x512xf32> -> vector<8x512xf32>
    %254 = arith.addf %250, %253 : vector<8x512xf32>
    %255 = vector.extract_strided_slice %254 {offsets = [0, 0], sizes = [8, 128], strides = [1, 1]} : vector<8x512xf32> to vector<8x128xf32>
    %256 = arith.negf %255 : vector<8x128xf32>
    %257 = math.exp %256 : vector<8x128xf32>
    %cst_46 = arith.constant 1.000000e+00 : f32
    %258 = vector.broadcast %cst_46 : f32 to vector<8x128xf32>
    %259 = arith.addf %258, %257 : vector<8x128xf32>
    %260 = arith.divf %258, %259 : vector<8x128xf32>
    %261 = vector.extract_strided_slice %254 {offsets = [0, 128], sizes = [8, 128], strides = [1, 1]} : vector<8x512xf32> to vector<8x128xf32>
    %262 = arith.negf %261 : vector<8x128xf32>
    %263 = math.exp %262 : vector<8x128xf32>
    %cst_47 = arith.constant 1.000000e+00 : f32
    %264 = vector.broadcast %cst_47 : f32 to vector<8x128xf32>
    %265 = arith.addf %264, %263 : vector<8x128xf32>
    %266 = arith.divf %264, %265 : vector<8x128xf32>
    %267 = vector.extract_strided_slice %254 {offsets = [0, 256], sizes = [8, 128], strides = [1, 1]} : vector<8x512xf32> to vector<8x128xf32>
    %268 = math.tanh %267 : vector<8x128xf32>
    %269 = vector.extract_strided_slice %254 {offsets = [0, 384], sizes = [8, 128], strides = [1, 1]} : vector<8x512xf32> to vector<8x128xf32>
    %270 = arith.negf %269 : vector<8x128xf32>
    %271 = math.exp %270 : vector<8x128xf32>
    %cst_48 = arith.constant 1.000000e+00 : f32
    %272 = vector.broadcast %cst_48 : f32 to vector<8x128xf32>
    %273 = arith.addf %272, %271 : vector<8x128xf32>
    %274 = arith.divf %272, %273 : vector<8x128xf32>
    %275 = arith.mulf %266, %236 : vector<8x128xf32>
    %276 = arith.mulf %260, %268 : vector<8x128xf32>
    %277 = arith.addf %275, %276 : vector<8x128xf32>
    %278 = math.tanh %277 : vector<8x128xf32>
    %279 = arith.mulf %274, %278 : vector<8x128xf32>
    %c5_i32 = arith.constant 5 : i32
    %c8_i32_49 = arith.constant 8 : i32
    %280 = arith.muli %c5_i32, %c8_i32_49 : i32
    %281 = tpu.assume_multiple %280, 8 : i32
    %282 = arith.index_cast %281 : i32 to index
    %c0_50 = arith.constant 0 : index
    %283 = vector.load %arg0[%282, %c0_50] : memref<64x2xf32, #tpu.memory_space<vmem>>, vector<8x2xf32>
    %284 = vector.extract_strided_slice %283 {offsets = [0, 0], sizes = [8, 1], strides = [1, 1]} : vector<8x2xf32> to vector<8x1xf32>
    %285 = vector.broadcast %284 : vector<8x1xf32> to vector<8x512xf32>
    %286 = arith.mulf %285, %71 : vector<8x512xf32>
    %287 = arith.addf %68, %286 : vector<8x512xf32>
    %288 = vector.extract_strided_slice %283 {offsets = [0, 1], sizes = [8, 1], strides = [1, 1]} : vector<8x2xf32> to vector<8x1xf32>
    %289 = vector.broadcast %288 : vector<8x1xf32> to vector<8x512xf32>
    %290 = arith.mulf %289, %74 : vector<8x512xf32>
    %291 = arith.addf %287, %290 : vector<8x512xf32>
    %292 = arith.truncf %279 : vector<8x128xf32> to vector<8x128xbf16>
    %c0_51 = arith.constant 0 : index
    %c0_52 = arith.constant 0 : index
    %293 = vector.load %arg5[%c0_51, %c0_52] : memref<128x512xbf16, #tpu.memory_space<vmem>>, vector<128x512xbf16>
    %cst_53 = arith.constant dense<0.000000e+00> : vector<8x512xf32>
    %294 = tpu.matmul %292, %293, %cst_53 {dimension_numbers = #tpu.dot_dimension_numbers<[1], [0], [0], [1], [0, 0, 1, 1], [], []>} : vector<8x128xbf16>, vector<128x512xbf16>, vector<8x512xf32> -> vector<8x512xf32>
    %295 = arith.addf %291, %294 : vector<8x512xf32>
    %296 = vector.extract_strided_slice %295 {offsets = [0, 0], sizes = [8, 128], strides = [1, 1]} : vector<8x512xf32> to vector<8x128xf32>
    %297 = arith.negf %296 : vector<8x128xf32>
    %298 = math.exp %297 : vector<8x128xf32>
    %cst_54 = arith.constant 1.000000e+00 : f32
    %299 = vector.broadcast %cst_54 : f32 to vector<8x128xf32>
    %300 = arith.addf %299, %298 : vector<8x128xf32>
    %301 = arith.divf %299, %300 : vector<8x128xf32>
    %302 = vector.extract_strided_slice %295 {offsets = [0, 128], sizes = [8, 128], strides = [1, 1]} : vector<8x512xf32> to vector<8x128xf32>
    %303 = arith.negf %302 : vector<8x128xf32>
    %304 = math.exp %303 : vector<8x128xf32>
    %cst_55 = arith.constant 1.000000e+00 : f32
    %305 = vector.broadcast %cst_55 : f32 to vector<8x128xf32>
    %306 = arith.addf %305, %304 : vector<8x128xf32>
    %307 = arith.divf %305, %306 : vector<8x128xf32>
    %308 = vector.extract_strided_slice %295 {offsets = [0, 256], sizes = [8, 128], strides = [1, 1]} : vector<8x512xf32> to vector<8x128xf32>
    %309 = math.tanh %308 : vector<8x128xf32>
    %310 = vector.extract_strided_slice %295 {offsets = [0, 384], sizes = [8, 128], strides = [1, 1]} : vector<8x512xf32> to vector<8x128xf32>
    %311 = arith.negf %310 : vector<8x128xf32>
    %312 = math.exp %311 : vector<8x128xf32>
    %cst_56 = arith.constant 1.000000e+00 : f32
    %313 = vector.broadcast %cst_56 : f32 to vector<8x128xf32>
    %314 = arith.addf %313, %312 : vector<8x128xf32>
    %315 = arith.divf %313, %314 : vector<8x128xf32>
    %316 = arith.mulf %307, %277 : vector<8x128xf32>
    %317 = arith.mulf %301, %309 : vector<8x128xf32>
    %318 = arith.addf %316, %317 : vector<8x128xf32>
    %319 = math.tanh %318 : vector<8x128xf32>
    %320 = arith.mulf %315, %319 : vector<8x128xf32>
    %c6_i32 = arith.constant 6 : i32
    %c8_i32_57 = arith.constant 8 : i32
    %321 = arith.muli %c6_i32, %c8_i32_57 : i32
    %322 = tpu.assume_multiple %321, 8 : i32
    %323 = arith.index_cast %322 : i32 to index
    %c0_58 = arith.constant 0 : index
    %324 = vector.load %arg0[%323, %c0_58] : memref<64x2xf32, #tpu.memory_space<vmem>>, vector<8x2xf32>
    %325 = vector.extract_strided_slice %324 {offsets = [0, 0], sizes = [8, 1], strides = [1, 1]} : vector<8x2xf32> to vector<8x1xf32>
    %326 = vector.broadcast %325 : vector<8x1xf32> to vector<8x512xf32>
    %327 = arith.mulf %326, %71 : vector<8x512xf32>
    %328 = arith.addf %68, %327 : vector<8x512xf32>
    %329 = vector.extract_strided_slice %324 {offsets = [0, 1], sizes = [8, 1], strides = [1, 1]} : vector<8x2xf32> to vector<8x1xf32>
    %330 = vector.broadcast %329 : vector<8x1xf32> to vector<8x512xf32>
    %331 = arith.mulf %330, %74 : vector<8x512xf32>
    %332 = arith.addf %328, %331 : vector<8x512xf32>
    %333 = arith.truncf %320 : vector<8x128xf32> to vector<8x128xbf16>
    %c0_59 = arith.constant 0 : index
    %c0_60 = arith.constant 0 : index
    %334 = vector.load %arg5[%c0_59, %c0_60] : memref<128x512xbf16, #tpu.memory_space<vmem>>, vector<128x512xbf16>
    %cst_61 = arith.constant dense<0.000000e+00> : vector<8x512xf32>
    %335 = tpu.matmul %333, %334, %cst_61 {dimension_numbers = #tpu.dot_dimension_numbers<[1], [0], [0], [1], [0, 0, 1, 1], [], []>} : vector<8x128xbf16>, vector<128x512xbf16>, vector<8x512xf32> -> vector<8x512xf32>
    %336 = arith.addf %332, %335 : vector<8x512xf32>
    %337 = vector.extract_strided_slice %336 {offsets = [0, 0], sizes = [8, 128], strides = [1, 1]} : vector<8x512xf32> to vector<8x128xf32>
    %338 = arith.negf %337 : vector<8x128xf32>
    %339 = math.exp %338 : vector<8x128xf32>
    %cst_62 = arith.constant 1.000000e+00 : f32
    %340 = vector.broadcast %cst_62 : f32 to vector<8x128xf32>
    %341 = arith.addf %340, %339 : vector<8x128xf32>
    %342 = arith.divf %340, %341 : vector<8x128xf32>
    %343 = vector.extract_strided_slice %336 {offsets = [0, 128], sizes = [8, 128], strides = [1, 1]} : vector<8x512xf32> to vector<8x128xf32>
    %344 = arith.negf %343 : vector<8x128xf32>
    %345 = math.exp %344 : vector<8x128xf32>
    %cst_63 = arith.constant 1.000000e+00 : f32
    %346 = vector.broadcast %cst_63 : f32 to vector<8x128xf32>
    %347 = arith.addf %346, %345 : vector<8x128xf32>
    %348 = arith.divf %346, %347 : vector<8x128xf32>
    %349 = vector.extract_strided_slice %336 {offsets = [0, 256], sizes = [8, 128], strides = [1, 1]} : vector<8x512xf32> to vector<8x128xf32>
    %350 = math.tanh %349 : vector<8x128xf32>
    %351 = vector.extract_strided_slice %336 {offsets = [0, 384], sizes = [8, 128], strides = [1, 1]} : vector<8x512xf32> to vector<8x128xf32>
    %352 = arith.negf %351 : vector<8x128xf32>
    %353 = math.exp %352 : vector<8x128xf32>
    %cst_64 = arith.constant 1.000000e+00 : f32
    %354 = vector.broadcast %cst_64 : f32 to vector<8x128xf32>
    %355 = arith.addf %354, %353 : vector<8x128xf32>
    %356 = arith.divf %354, %355 : vector<8x128xf32>
    %357 = arith.mulf %348, %318 : vector<8x128xf32>
    %358 = arith.mulf %342, %350 : vector<8x128xf32>
    %359 = arith.addf %357, %358 : vector<8x128xf32>
    %360 = math.tanh %359 : vector<8x128xf32>
    %361 = arith.mulf %356, %360 : vector<8x128xf32>
    %c7_i32 = arith.constant 7 : i32
    %c8_i32_65 = arith.constant 8 : i32
    %362 = arith.muli %c7_i32, %c8_i32_65 : i32
    %363 = tpu.assume_multiple %362, 8 : i32
    %364 = arith.index_cast %363 : i32 to index
    %c0_66 = arith.constant 0 : index
    %365 = vector.load %arg0[%364, %c0_66] : memref<64x2xf32, #tpu.memory_space<vmem>>, vector<8x2xf32>
    %366 = vector.extract_strided_slice %365 {offsets = [0, 0], sizes = [8, 1], strides = [1, 1]} : vector<8x2xf32> to vector<8x1xf32>
    %367 = vector.broadcast %366 : vector<8x1xf32> to vector<8x512xf32>
    %368 = arith.mulf %367, %71 : vector<8x512xf32>
    %369 = arith.addf %68, %368 : vector<8x512xf32>
    %370 = vector.extract_strided_slice %365 {offsets = [0, 1], sizes = [8, 1], strides = [1, 1]} : vector<8x2xf32> to vector<8x1xf32>
    %371 = vector.broadcast %370 : vector<8x1xf32> to vector<8x512xf32>
    %372 = arith.mulf %371, %74 : vector<8x512xf32>
    %373 = arith.addf %369, %372 : vector<8x512xf32>
    %374 = arith.truncf %361 : vector<8x128xf32> to vector<8x128xbf16>
    %c0_67 = arith.constant 0 : index
    %c0_68 = arith.constant 0 : index
    %375 = vector.load %arg5[%c0_67, %c0_68] : memref<128x512xbf16, #tpu.memory_space<vmem>>, vector<128x512xbf16>
    %cst_69 = arith.constant dense<0.000000e+00> : vector<8x512xf32>
    %376 = tpu.matmul %374, %375, %cst_69 {dimension_numbers = #tpu.dot_dimension_numbers<[1], [0], [0], [1], [0, 0, 1, 1], [], []>} : vector<8x128xbf16>, vector<128x512xbf16>, vector<8x512xf32> -> vector<8x512xf32>
    %377 = arith.addf %373, %376 : vector<8x512xf32>
    %378 = vector.extract_strided_slice %377 {offsets = [0, 0], sizes = [8, 128], strides = [1, 1]} : vector<8x512xf32> to vector<8x128xf32>
    %379 = arith.negf %378 : vector<8x128xf32>
    %380 = math.exp %379 : vector<8x128xf32>
    %cst_70 = arith.constant 1.000000e+00 : f32
    %381 = vector.broadcast %cst_70 : f32 to vector<8x128xf32>
    %382 = arith.addf %381, %380 : vector<8x128xf32>
    %383 = arith.divf %381, %382 : vector<8x128xf32>
    %384 = vector.extract_strided_slice %377 {offsets = [0, 128], sizes = [8, 128], strides = [1, 1]} : vector<8x512xf32> to vector<8x128xf32>
    %385 = arith.negf %384 : vector<8x128xf32>
    %386 = math.exp %385 : vector<8x128xf32>
    %cst_71 = arith.constant 1.000000e+00 : f32
    %387 = vector.broadcast %cst_71 : f32 to vector<8x128xf32>
    %388 = arith.addf %387, %386 : vector<8x128xf32>
    %389 = arith.divf %387, %388 : vector<8x128xf32>
    %390 = vector.extract_strided_slice %377 {offsets = [0, 256], sizes = [8, 128], strides = [1, 1]} : vector<8x512xf32> to vector<8x128xf32>
    %391 = math.tanh %390 : vector<8x128xf32>
    %392 = vector.extract_strided_slice %377 {offsets = [0, 384], sizes = [8, 128], strides = [1, 1]} : vector<8x512xf32> to vector<8x128xf32>
    %393 = arith.negf %392 : vector<8x128xf32>
    %394 = math.exp %393 : vector<8x128xf32>
    %cst_72 = arith.constant 1.000000e+00 : f32
    %395 = vector.broadcast %cst_72 : f32 to vector<8x128xf32>
    %396 = arith.addf %395, %394 : vector<8x128xf32>
    %397 = arith.divf %395, %396 : vector<8x128xf32>
    %398 = arith.mulf %389, %359 : vector<8x128xf32>
    %399 = arith.mulf %383, %391 : vector<8x128xf32>
    %400 = arith.addf %398, %399 : vector<8x128xf32>
    %401 = math.tanh %400 : vector<8x128xf32>
    %402 = arith.mulf %397, %401 : vector<8x128xf32>
    %c8_i32_73 = arith.constant 8 : i32
    %c0_74 = arith.constant 0 : index
    %c0_75 = arith.constant 0 : index
    %403 = vector.load %arg7[%c0_74, %c0_75] : memref<1x128xf32, #tpu.memory_space<vmem>>, vector<1x128xf32>
    %404 = vector.broadcast %403 : vector<1x128xf32> to vector<8x128xf32>
    %405 = arith.mulf %402, %404 : vector<8x128xf32>
    %cst_76 = arith.constant dense<0.000000e+00> : vector<8xf32>
    %406 = vector.multi_reduction <add>, %405, %cst_76 [1] : vector<8x128xf32> to vector<8xf32>
    %407 = vector.shape_cast %406 : vector<8xf32> to vector<8x1xf32>
    %c0_77 = arith.constant 0 : index
    %c0_78 = arith.constant 0 : index
    %408 = memref.load %arg8[%c0_77, %c0_78] : memref<1x1xf32, #tpu.memory_space<smem>>
    %409 = vector.broadcast %408 : f32 to vector<8x1xf32>
    %410 = arith.addf %407, %409 : vector<8x1xf32>
    %411 = arith.negf %410 : vector<8x1xf32>
    %412 = math.exp %411 : vector<8x1xf32>
    %cst_79 = arith.constant 1.000000e+00 : f32
    %413 = vector.broadcast %cst_79 : f32 to vector<8x1xf32>
    %414 = arith.addf %413, %412 : vector<8x1xf32>
    %415 = arith.divf %413, %414 : vector<8x1xf32>
    %c0_80 = arith.constant 0 : index
    %c0_81 = arith.constant 0 : index
    %416 = vector.load %arg9[%c0_80, %c0_81] : memref<8x1xf32, #tpu.memory_space<vmem>>, vector<8x1xf32>
    tpu.vector_store %arg9[%c0_80, %c0_81], %415 {strides = array<i32>} : memref<8x1xf32, #tpu.memory_space<vmem>>, vector<8x1xf32>,
    return
  }
}

</mosaic_0001>

<llo_original>
// kernel: lstm_model_forward.1
$region0: #{lstm_model_forward.1}
  #allocation0 [shape = 'u32[]', space=smem, size = 0x4, offset = 0x4, fixed_abs, tag = 'smem constant byte address 0x4 - core index']
  #allocation1 [shape = 'u32[144,128]{1,0:T(1,128)}', space=vmem, size = 0x12000, scoped, tag = 'internal scratch']
  #allocation2 [shape = 'f32[1,1]{1,0:T(1,128)S(6)}', space=smem, size = 0x200, scoped, tag = 'scoped memory for lstm_model_forward.1']
  %s0 = inlined_call_operand.vmem [shape: f32[64,2], index: 0, kind: input, shape index: {}]
  %s1 = inlined_call_operand.vmem [shape: f32[8,10], index: 1, kind: input, shape index: {}]
  %s2 = inlined_call_operand.vmem [shape: f32[10,128], index: 2, kind: input, shape index: {}]
  %s3 = inlined_call_operand.vmem [shape: f32[1,128], index: 3, kind: input, shape index: {}]
  %s4 = inlined_call_operand.vmem [shape: f32[2,512], index: 4, kind: input, shape index: {}]
  %s5 = inlined_call_operand.hbm [shape: bf16[128,512], index: 5, kind: input, shape index: {}]
  %s6 = inlined_call_operand.vmem [shape: f32[1,512], index: 6, kind: input, shape index: {}]
  %s7 = inlined_call_operand.vmem [shape: f32[1,128], index: 7, kind: input, shape index: {}]
  %s8 = inlined_call_operand.<no memory space> [shape: f32[1,1], index: 8, kind: input, shape index: {}]
  %s9 = inlined_call_operand.vmem [shape: f32[8,1], index: 9, kind: output, shape index: {}]
  %s10 = sld [smem:[#allocation0]]
  $region50: #{lstm_model_forward.1} parent=0
    _
  %s12 = ssub.s32 1, %s10
  %s13 = scalar_select 0, %s12, %s10
  %14 = sst [smem:[#allocation2]] %s8
  $region1: #{lstm_model_forward.1} parent=0
    #allocation3 [shape = 'u8[131072]{0}', space=vmem, size = 0x20000, scoped, tag = 'input window, operand 5, single buffered']
    #allocation4 [shape = 's32[1]{0}', space=sflag, size = 0x4, scoped, tag = 'scoped memory for lstm_model_forward.1']
    %15 = vsyncpa [#allocation4], 0
    // Predicated region
    $region2: #{lstm_model_forward.1} parent=1 // pred_check
      _
    $region3: #{lstm_model_forward.1} parent=1 // pred_check_branch
      %17 = sbr.rel (0) target = $region5
    $region4: #{lstm_model_forward.1} parent=1 // pred_region
      _
    $region5: #{lstm_model_forward.1} parent=1 // pred_fallthru
      _
    // Predicated region
    $region6: #{lstm_model_forward.1} parent=1 // pred_check
      _
    $region7: #{lstm_model_forward.1} parent=1 // pred_check_branch
      %19 = sbr.rel (0) target = $region9
    $region8: #{lstm_model_forward.1} parent=1 // pred_region
      _
    $region9: #{lstm_model_forward.1} parent=1 // pred_fallthru
      _
    // Predicated region
    $region10: #{lstm_model_forward.1} parent=1 // pred_check
      _
    $region11: #{lstm_model_forward.1} parent=1 // pred_check_branch
      %21 = sbr.rel (0) target = $region13
    $region12: #{lstm_model_forward.1} parent=1 // pred_region
      _
    $region13: #{lstm_model_forward.1} parent=1 // pred_fallthru
      _
    // Predicated region
    $region14: #{lstm_model_forward.1} parent=1 // pred_check
      _
    $region15: #{lstm_model_forward.1} parent=1 // pred_check_branch
      %23 = sbr.rel (0) target = $region17
    $region16: #{lstm_model_forward.1} parent=1 // pred_region
      _
    $region17: #{lstm_model_forward.1} parent=1 // pred_fallthru
      _
    // Predicated region
    $region18: #{lstm_model_forward.1} parent=1 // pred_check
      _
    $region19: #{lstm_model_forward.1} parent=1 // pred_check_branch
      %25 = sbr.rel (0) target = $region21
    $region20: #{lstm_model_forward.1} parent=1 // pred_region
      _
    $region21: #{lstm_model_forward.1} parent=1 // pred_fallthru
      _
    // Predicated region
    $region22: #{lstm_model_forward.1} parent=1 // pred_check
      _
    $region23: #{lstm_model_forward.1} parent=1 // pred_check_branch
      %27 = sbr.rel (0) target = $region25
    $region24: #{lstm_model_forward.1} parent=1 // pred_region
      %s29 = ssub.s32 4096, 4096
      %30 = vsyncadd [#allocation4], %s29
      %s31 = sshll.u32 [#allocation3], 4
      %s32 = int_to_ptr.vmem [resolvable:$true] %s31
      %37 = dma.hbm_to_vmem [thread:$0]  %s5, 4096, %s32, [#allocation4], 256, 256, 16
    $region25: #{lstm_model_forward.1} parent=1 // pred_fallthru
      _
    // Predicated region
    $region26: #{lstm_model_forward.1} parent=1 // pred_check
      _
    $region27: #{lstm_model_forward.1} parent=1 // pred_check_branch
      %39 = sbr.rel (0) target = $region29
    $region28: #{lstm_model_forward.1} parent=1 // pred_region
      _
    $region29: #{lstm_model_forward.1} parent=1 // pred_fallthru
      _
    // Predicated region
    $region30: #{lstm_model_forward.1} parent=1 // pred_check
      _
    $region31: #{lstm_model_forward.1} parent=1 // pred_check_branch
      %41 = sbr.rel (0) target = $region33
    $region32: #{lstm_model_forward.1} parent=1 // pred_region
      _
    $region33: #{lstm_model_forward.1} parent=1 // pred_fallthru
      _
    // Predicated region
    $region34: #{lstm_model_forward.1} parent=1 // pred_check
      _
    $region35: #{lstm_model_forward.1} parent=1 // pred_check_branch
      %43 = sbr.rel (0) target = $region37
    $region36: #{lstm_model_forward.1} parent=1 // pred_region
      _
    $region37: #{lstm_model_forward.1} parent=1 // pred_fallthru
      _
    // Predicated region
    $region38: #{lstm_model_forward.1} parent=1 // pred_check
      _
    $region39: #{lstm_model_forward.1} parent=1 // pred_check_branch
      %45 = sbr.rel (0) target = $region41
    $region40: #{lstm_model_forward.1} parent=1 // pred_region
      %46 = dma.done [#allocation4], 4096
    $region41: #{lstm_model_forward.1} parent=1 // pred_fallthru
      _
    %v48 = vld [vmem:[%s1] sm:$0xff]
    %v49 = vld [vmem:[%s2] sm:$0xff]
    %v50 = vld [vmem:[%s2 + $0x8] sm:$0x3]
    %v51 = vld [vmem:[%s3] sm:$0x1]
    %v53 = vlaneseq
    %v54 = vshrl.u32 %v53, 7
    %v55 = vsub.s32 0, %v54
    %v56 = vrot.slane %v51, %v55
    %59 = vset.pattern.permute.xlu0 0
    %60 = vperm.xlu0 %59, %v48
    %v61 = vpop.permute.xlu0 %60
    %v63 = vlaneseq
    %v64 = vshrl.u32 %v63, 7
    %v65 = vsub.s32 0, %v64
    %v66 = vrot.slane %v49, %v65
    %v67 = vmul.f32 %v61, %v66
    %v68 = vadd.f32 %v56, %v67
    %69 = vset.pattern.permute.xlu0 1
    %70 = vperm.xlu0 %69, %v48
    %v71 = vpop.permute.xlu0 %70
    %v73 = vlaneseq
    %v74 = vshrl.u32 %v73, 7
    %v75 = vsub.s32 1, %v74
    %v76 = vrot.slane %v49, %v75
    %v77 = vmul.f32 %v71, %v76
    %v78 = vadd.f32 %v68, %v77
    %79 = vset.pattern.permute.xlu0 2
    %80 = vperm.xlu0 %79, %v48
    %v81 = vpop.permute.xlu0 %80
    %v83 = vlaneseq
    %v84 = vshrl.u32 %v83, 7
    %v85 = vsub.s32 2, %v84
    %v86 = vrot.slane %v49, %v85
    %v87 = vmul.f32 %v81, %v86
    %v88 = vadd.f32 %v78, %v87
    %89 = vset.pattern.permute.xlu0 3
    %90 = vperm.xlu0 %89, %v48
    %v91 = vpop.permute.xlu0 %90
    %v93 = vlaneseq
    %v94 = vshrl.u32 %v93, 7
    %v95 = vsub.s32 3, %v94
    %v96 = vrot.slane %v49, %v95
    %v97 = vmul.f32 %v91, %v96
    %v98 = vadd.f32 %v88, %v97
    %99 = vset.pattern.permute.xlu0 4
    %100 = vperm.xlu0 %99, %v48
    %v101 = vpop.permute.xlu0 %100
    %v103 = vlaneseq
    %v104 = vshrl.u32 %v103, 7
    %v105 = vsub.s32 4, %v104
    %v106 = vrot.slane %v49, %v105
    %v107 = vmul.f32 %v101, %v106
    %v108 = vadd.f32 %v98, %v107
    %109 = vset.pattern.permute.xlu0 5
    %110 = vperm.xlu0 %109, %v48
    %v111 = vpop.permute.xlu0 %110
    %v113 = vlaneseq
    %v114 = vshrl.u32 %v113, 7
    %v115 = vsub.s32 5, %v114
    %v116 = vrot.slane %v49, %v115
    %v117 = vmul.f32 %v111, %v116
    %v118 = vadd.f32 %v108, %v117
    %119 = vset.pattern.permute.xlu0 6
    %120 = vperm.xlu0 %119, %v48
    %v121 = vpop.permute.xlu0 %120
    %v123 = vlaneseq
    %v124 = vshrl.u32 %v123, 7
    %v125 = vsub.s32 6, %v124
    %v126 = vrot.slane %v49, %v125
    %v127 = vmul.f32 %v121, %v126
    %v128 = vadd.f32 %v118, %v127
    %129 = vset.pattern.permute.xlu0 7
    %130 = vperm.xlu0 %129, %v48
    %v131 = vpop.permute.xlu0 %130
    %v133 = vlaneseq
    %v134 = vshrl.u32 %v133, 7
    %v135 = vsub.s32 7, %v134
    %v136 = vrot.slane %v49, %v135
    %v137 = vmul.f32 %v131, %v136
    %v138 = vadd.f32 %v128, %v137
    %139 = vset.pattern.permute.xlu0 8
    %140 = vperm.xlu0 %139, %v48
    %v141 = vpop.permute.xlu0 %140
    %v143 = vlaneseq
    %v144 = vshrl.u32 %v143, 7
    %v145 = vsub.s32 0, %v144
    %v146 = vrot.slane %v50, %v145
    %v147 = vmul.f32 %v141, %v146
    %v148 = vadd.f32 %v138, %v147
    %149 = vset.pattern.permute.xlu0 9
    %150 = vperm.xlu0 %149, %v48
    %v151 = vpop.permute.xlu0 %150
    %v153 = vlaneseq
    %v154 = vshrl.u32 %v153, 7
    %v155 = vsub.s32 1, %v154
    %v156 = vrot.slane %v50, %v155
    %v157 = vmul.f32 %v151, %v156
    %v158 = vadd.f32 %v148, %v157
    %v159 = vld [vmem:[%s6] sm:$0xf]
    %v161 = vlaneseq
    %v162 = vshrl.u32 %v161, 7
    %v163 = vsub.s32 0, %v162
    %v164 = vrot.slane %v159, %v163
    %v165 = vlaneseq
    %v166 = vshrl.u32 %v165, 7
    %v167 = vsub.s32 1, %v166
    %v168 = vrot.slane %v159, %v167
    %v169 = vlaneseq
    %v170 = vshrl.u32 %v169, 7
    %v171 = vsub.s32 2, %v170
    %v172 = vrot.slane %v159, %v171
    %v173 = vlaneseq
    %v174 = vshrl.u32 %v173, 7
    %v175 = vsub.s32 3, %v174
    %v176 = vrot.slane %v159, %v175
    %v181 = vld [vmem:[%s4] ss:$2 sm:$0xf]
    %v183 = vlaneseq
    %v184 = vshrl.u32 %v183, 7
    %v185 = vsub.s32 0, %v184
    %v186 = vrot.slane %v181, %v185
    %v187 = vlaneseq
    %v188 = vshrl.u32 %v187, 7
    %v189 = vsub.s32 1, %v188
    %v190 = vrot.slane %v181, %v189
    %v191 = vlaneseq
    %v192 = vshrl.u32 %v191, 7
    %v193 = vsub.s32 2, %v192
    %v194 = vrot.slane %v181, %v193
    %v195 = vlaneseq
    %v196 = vshrl.u32 %v195, 7
    %v197 = vsub.s32 3, %v196
    %v198 = vrot.slane %v181, %v197
    %s203 = scalar_lea.vmem %s4, 1
    %v204 = vld [vmem:[%s203] ss:$2 sm:$0xf]
    %v206 = vlaneseq
    %v207 = vshrl.u32 %v206, 7
    %v208 = vsub.s32 0, %v207
    %v209 = vrot.slane %v204, %v208
    %v210 = vlaneseq
    %v211 = vshrl.u32 %v210, 7
    %v212 = vsub.s32 1, %v211
    %v213 = vrot.slane %v204, %v212
    %v214 = vlaneseq
    %v215 = vshrl.u32 %v214, 7
    %v216 = vsub.s32 2, %v215
    %v217 = vrot.slane %v204, %v216
    %v218 = vlaneseq
    %v219 = vshrl.u32 %v218, 7
    %v220 = vsub.s32 3, %v219
    %v221 = vrot.slane %v204, %v220
    %v226 = vld [vmem:[%s0] sm:$0xff]
    %228 = vset.pattern.permute.xlu0 0
    %229 = vperm.xlu0 %228, %v226
    %v230 = vpop.permute.xlu0 %229
    %v232 = vmul.f32 %v230, %v186
    %v233 = vmul.f32 %v230, %v190
    %v234 = vmul.f32 %v230, %v194
    %v235 = vmul.f32 %v230, %v198
    %v236 = vadd.f32 %v164, %v232
    %v237 = vadd.f32 %v168, %v233
    %v238 = vadd.f32 %v172, %v234
    %v239 = vadd.f32 %v176, %v235
    %240 = vset.pattern.permute.xlu0 1
    %241 = vperm.xlu0 %240, %v226
    %v242 = vpop.permute.xlu0 %241
    %v244 = vmul.f32 %v242, %v209
    %v245 = vmul.f32 %v242, %v213
    %v246 = vmul.f32 %v242, %v217
    %v247 = vmul.f32 %v242, %v221
    %v248 = vadd.f32 %v236, %v244
    %v249 = vadd.f32 %v237, %v245
    %v250 = vadd.f32 %v238, %v246
    %v251 = vadd.f32 %v239, %v247
    %v252 = vpack.c.bf16 %v158, %v158
    %v253 = vld [vmem:[#allocation3] sm:$0xff]
    %v254 = vld [vmem:[#allocation3 + $0x8] sm:$0xff]
    %v255 = vld [vmem:[#allocation3 + $0x10] sm:$0xff]
    %v256 = vld [vmem:[#allocation3 + $0x18] sm:$0xff]
    %v257 = vld [vmem:[#allocation3 + $0x20] sm:$0xff]
    %v258 = vld [vmem:[#allocation3 + $0x28] sm:$0xff]
    %v259 = vld [vmem:[#allocation3 + $0x30] sm:$0xff]
    %v260 = vld [vmem:[#allocation3 + $0x38] sm:$0xff]
    %v261 = vld [vmem:[#allocation3 + $0x40] sm:$0xff]
    %v262 = vld [vmem:[#allocation3 + $0x48] sm:$0xff]
    %v263 = vld [vmem:[#allocation3 + $0x50] sm:$0xff]
    %v264 = vld [vmem:[#allocation3 + $0x58] sm:$0xff]
    %v265 = vld [vmem:[#allocation3 + $0x60] sm:$0xff]
    %v266 = vld [vmem:[#allocation3 + $0x68] sm:$0xff]
    %v267 = vld [vmem:[#allocation3 + $0x70] sm:$0xff]
    %v268 = vld [vmem:[#allocation3 + $0x78] sm:$0xff]
    %v269 = vld [vmem:[#allocation3 + $0x80] sm:$0xff]
    %v270 = vld [vmem:[#allocation3 + $0x88] sm:$0xff]
    %v271 = vld [vmem:[#allocation3 + $0x90] sm:$0xff]
    %v272 = vld [vmem:[#allocation3 + $0x98] sm:$0xff]
    %v273 = vld [vmem:[#allocation3 + $0xa0] sm:$0xff]
    %v274 = vld [vmem:[#allocation3 + $0xa8] sm:$0xff]
    %v275 = vld [vmem:[#allocation3 + $0xb0] sm:$0xff]
    %v276 = vld [vmem:[#allocation3 + $0xb8] sm:$0xff]
    %v277 = vld [vmem:[#allocation3 + $0xc0] sm:$0xff]
    %v278 = vld [vmem:[#allocation3 + $0xc8] sm:$0xff]
    %v279 = vld [vmem:[#allocation3 + $0xd0] sm:$0xff]
    %v280 = vld [vmem:[#allocation3 + $0xd8] sm:$0xff]
    %v281 = vld [vmem:[#allocation3 + $0xe0] sm:$0xff]
    %v282 = vld [vmem:[#allocation3 + $0xe8] sm:$0xff]
    %v283 = vld [vmem:[#allocation3 + $0xf0] sm:$0xff]
    %v284 = vld [vmem:[#allocation3 + $0xf8] sm:$0xff]
    %v317 = vunpack.c.l.b16 %v253
    %v318 = vunpack.c.h.b16 %v253
    %v319 = vunpack.c.l.b16 %v254
    %v320 = vunpack.c.h.b16 %v254
    %v321 = vunpack.c.l.b16 %v255
    %v322 = vunpack.c.h.b16 %v255
    %v323 = vunpack.c.l.b16 %v256
    %v324 = vunpack.c.h.b16 %v256
    %v325 = vunpack.c.l.b16 %v257
    %v326 = vunpack.c.h.b16 %v257
    %v327 = vunpack.c.l.b16 %v258
    %v328 = vunpack.c.h.b16 %v258
    %v329 = vunpack.c.l.b16 %v259
    %v330 = vunpack.c.h.b16 %v259
    %v331 = vunpack.c.l.b16 %v260
    %v332 = vunpack.c.h.b16 %v260
    %v333 = vunpack.c.l.b16 %v261
    %v334 = vunpack.c.h.b16 %v261
    %v335 = vunpack.c.l.b16 %v262
    %v336 = vunpack.c.h.b16 %v262
    %v337 = vunpack.c.l.b16 %v263
    %v338 = vunpack.c.h.b16 %v263
    %v339 = vunpack.c.l.b16 %v264
    %v340 = vunpack.c.h.b16 %v264
    %v341 = vunpack.c.l.b16 %v265
    %v342 = vunpack.c.h.b16 %v265
    %v343 = vunpack.c.l.b16 %v266
    %v344 = vunpack.c.h.b16 %v266
    %v345 = vunpack.c.l.b16 %v267
    %v346 = vunpack.c.h.b16 %v267
    %v347 = vunpack.c.l.b16 %v268
    %v348 = vunpack.c.h.b16 %v268
    %v349 = vunpack.c.l.b16 %v269
    %v350 = vunpack.c.h.b16 %v269
    %v351 = vunpack.c.l.b16 %v270
    %v352 = vunpack.c.h.b16 %v270
    %v353 = vunpack.c.l.b16 %v271
    %v354 = vunpack.c.h.b16 %v271
    %v355 = vunpack.c.l.b16 %v272
    %v356 = vunpack.c.h.b16 %v272
    %v357 = vunpack.c.l.b16 %v273
    %v358 = vunpack.c.h.b16 %v273
    %v359 = vunpack.c.l.b16 %v274
    %v360 = vunpack.c.h.b16 %v274
    %v361 = vunpack.c.l.b16 %v275
    %v362 = vunpack.c.h.b16 %v275
    %v363 = vunpack.c.l.b16 %v276
    %v364 = vunpack.c.h.b16 %v276
    %v365 = vunpack.c.l.b16 %v277
    %v366 = vunpack.c.h.b16 %v277
    %v367 = vunpack.c.l.b16 %v278
    %v368 = vunpack.c.h.b16 %v278
    %v369 = vunpack.c.l.b16 %v279
    %v370 = vunpack.c.h.b16 %v279
    %v371 = vunpack.c.l.b16 %v280
    %v372 = vunpack.c.h.b16 %v280
    %v373 = vunpack.c.l.b16 %v281
    %v374 = vunpack.c.h.b16 %v281
    %v375 = vunpack.c.l.b16 %v282
    %v376 = vunpack.c.h.b16 %v282
    %v377 = vunpack.c.l.b16 %v283
    %v378 = vunpack.c.h.b16 %v283
    %v379 = vunpack.c.l.b16 %v284
    %v380 = vunpack.c.h.b16 %v284
    %v381 = vpack.c.b16 %v321, %v317
    %v382 = vpack.c.b16 %v322, %v318
    %v383 = vpack.c.b16 %v323, %v319
    %v384 = vpack.c.b16 %v324, %v320
    %v385 = vpack.c.b16 %v329, %v325
    %v386 = vpack.c.b16 %v330, %v326
    %v387 = vpack.c.b16 %v331, %v327
    %v388 = vpack.c.b16 %v332, %v328
    %v389 = vpack.c.b16 %v337, %v333
    %v390 = vpack.c.b16 %v338, %v334
    %v391 = vpack.c.b16 %v339, %v335
    %v392 = vpack.c.b16 %v340, %v336
    %v393 = vpack.c.b16 %v345, %v341
    %v394 = vpack.c.b16 %v346, %v342
    %v395 = vpack.c.b16 %v347, %v343
    %v396 = vpack.c.b16 %v348, %v344
    %v397 = vpack.c.b16 %v353, %v349
    %v398 = vpack.c.b16 %v354, %v350
    %v399 = vpack.c.b16 %v355, %v351
    %v400 = vpack.c.b16 %v356, %v352
    %v401 = vpack.c.b16 %v361, %v357
    %v402 = vpack.c.b16 %v362, %v358
    %v403 = vpack.c.b16 %v363, %v359
    %v404 = vpack.c.b16 %v364, %v360
    %v405 = vpack.c.b16 %v369, %v365
    %v406 = vpack.c.b16 %v370, %v366
    %v407 = vpack.c.b16 %v371, %v367
    %v408 = vpack.c.b16 %v372, %v368
    %v409 = vpack.c.b16 %v377, %v373
    %v410 = vpack.c.b16 %v378, %v374
    %v411 = vpack.c.b16 %v379, %v375
    %v412 = vpack.c.b16 %v380, %v376
    %445 = vmatprep.subr.bf16.mxu0 %v410
    %446 = vmatpush1.bf16.msra.mxu0 %v409
    %447 = vmatprep.subr.bf16.mxu0 %v406
    %448 = vmatpush1.bf16.msra.mxu0 %v405
    %449 = vmatprep.subr.bf16.mxu0 %v402
    %450 = vmatpush1.bf16.msra.mxu0 %v401
    %451 = vmatprep.subr.bf16.mxu0 %v398
    %452 = vmatpush1.bf16.msra.mxu0 %v397
    %453 = vmatprep.subr.bf16.mxu0 %v394
    %454 = vmatpush1.bf16.msra.mxu0 %v393
    %455 = vmatprep.subr.bf16.mxu0 %v390
    %456 = vmatpush1.bf16.msra.mxu0 %v389
    %457 = vmatprep.subr.bf16.mxu0 %v386
    %458 = vmatpush1.bf16.msra.mxu0 %v385
    %459 = vmatprep.subr.bf16.mxu0 %v382
    %460 = vmatpush1.bf16.msra.mxu0 %v381
    %461 = vmatprep.subr.bf16.mxu0 0
    %462 = vmatpush2.bf16.msra.mxu0 0
    %463 = vmatprep.subr.bf16.mxu0 0
    %464 = vmatpush2.bf16.msra.mxu0 0
    %465 = vmatprep.subr.bf16.mxu0 0
    %466 = vmatpush2.bf16.msra.mxu0 0
    %467 = vmatprep.subr.bf16.mxu0 0
    %468 = vmatpush2.bf16.msra.mxu0 0
    %469 = vmatprep.subr.bf16.mxu0 0
    %470 = vmatpush2.bf16.msra.mxu0 0
    %471 = vmatprep.subr.bf16.mxu0 0
    %472 = vmatpush2.bf16.msra.mxu0 0
    %473 = vmatprep.subr.bf16.mxu0 0
    %474 = vmatpush2.bf16.msra.mxu0 0
    %475 = vmatprep.subr.bf16.mxu0 0
    %476 = vmatpush2.bf16.msra.mxu0 0
    %477 = vmatprep.mubr.bf16.mxu0 0
    %478 = vmatmul.mubr.bf16.gmra.mxu0 %v252
    %v479 = vpop.f32.mrf.mxu0
    %v480 = vadd.f32 0.0, %v479
    %v481 = vpop.f32.mrf.mxu0
    %v482 = vadd.f32 0.0, %v481
    %v483 = vpop.f32.mrf.mxu0
    %v484 = vpop.f32.mrf.mxu0
    %485 = vdwg.mxu0
    %486 = vmatprep.subr.bf16.mxu0 %v412
    %487 = vmatpush1.bf16.msra.mxu0 %v411
    %488 = vmatprep.subr.bf16.mxu0 %v408
    %489 = vmatpush1.bf16.msra.mxu0 %v407
    %490 = vmatprep.subr.bf16.mxu0 %v404
    %491 = vmatpush1.bf16.msra.mxu0 %v403
    %492 = vmatprep.subr.bf16.mxu0 %v400
    %493 = vmatpush1.bf16.msra.mxu0 %v399
    %494 = vmatprep.subr.bf16.mxu0 %v396
    %495 = vmatpush1.bf16.msra.mxu0 %v395
    %496 = vmatprep.subr.bf16.mxu0 %v392
    %497 = vmatpush1.bf16.msra.mxu0 %v391
    %498 = vmatprep.subr.bf16.mxu0 %v388
    %499 = vmatpush1.bf16.msra.mxu0 %v387
    %500 = vmatprep.subr.bf16.mxu0 %v384
    %501 = vmatpush1.bf16.msra.mxu0 %v383
    %502 = vmatprep.subr.bf16.mxu0 0
    %503 = vmatpush2.bf16.msra.mxu0 0
    %504 = vmatprep.subr.bf16.mxu0 0
    %505 = vmatpush2.bf16.msra.mxu0 0
    %506 = vmatprep.subr.bf16.mxu0 0
    %507 = vmatpush2.bf16.msra.mxu0 0
    %508 = vmatprep.subr.bf16.mxu0 0
    %509 = vmatpush2.bf16.msra.mxu0 0
    %510 = vmatprep.subr.bf16.mxu0 0
    %511 = vmatpush2.bf16.msra.mxu0 0
    %512 = vmatprep.subr.bf16.mxu0 0
    %513 = vmatpush2.bf16.msra.mxu0 0
    %514 = vmatprep.subr.bf16.mxu0 0
    %515 = vmatpush2.bf16.msra.mxu0 0
    %516 = vmatprep.subr.bf16.mxu0 0
    %517 = vmatpush2.bf16.msra.mxu0 0
    %518 = vmatprep.mubr.bf16.mxu0 0
    %519 = vmatmul.mubr.bf16.gmra.mxu0 %v252
    %v520 = vpop.f32.mrf.mxu0
    %v521 = vadd.f32 0.0, %v520
    %v522 = vpop.f32.mrf.mxu0
    %v523 = vadd.f32 0.0, %v522
    %v524 = vpop.f32.mrf.mxu0
    %v525 = vpop.f32.mrf.mxu0
    %526 = vdwg.mxu0
    %v527 = vadd.f32 %v248, %v480
    %v528 = vadd.f32 %v249, %v482
    %v529 = vadd.f32 %v250, %v521
    %v530 = vadd.f32 %v251, %v523
    %v531 = vxor.u32 %v527, 2147483648
    %v532 = vmul.f32 %v531, 1.442695
    %v533 = vpow.pop %v532
    %v534 = vadd.f32 %v533, 1.0
    %v535 = vrcp.pop %v534
    %v536 = vmul.f32 1.0, %v535
    %v537 = vxor.u32 %v528, 2147483648
    %v538 = vmul.f32 %v537, 1.442695
    %v539 = vpow.pop %v538
    %v540 = vadd.f32 %v539, 1.0
    %v541 = vrcp.pop %v540
    %v542 = vmul.f32 1.0, %v541
    %v543 = vtanh.pop %v529
    %v544 = vxor.u32 %v530, 2147483648
    %v545 = vmul.f32 %v544, 1.442695
    %v546 = vpow.pop %v545
    %v547 = vadd.f32 %v546, 1.0
    %v548 = vrcp.pop %v547
    %v549 = vmul.f32 1.0, %v548
    %v550 = vmul.f32 %v542, 0.0
    %v551 = vmul.f32 %v536, %v543
    %v552 = vadd.f32 %v550, %v551
    %v553 = vtanh.pop %v552
    %v554 = vmul.f32 %v549, %v553
    %s555 = scalar_lea.vmem %s0, 8
    %v556 = vld [vmem:[%s555] sm:$0xff]
    %558 = vset.pattern.permute.xlu0 0
    %559 = vperm.xlu0 %558, %v556
    %v560 = vpop.permute.xlu0 %559
    %v562 = vmul.f32 %v560, %v186
    %v563 = vmul.f32 %v560, %v190
    %v564 = vmul.f32 %v560, %v194
    %v565 = vmul.f32 %v560, %v198
    %v566 = vadd.f32 %v164, %v562
    %v567 = vadd.f32 %v168, %v563
    %v568 = vadd.f32 %v172, %v564
    %v569 = vadd.f32 %v176, %v565
    %570 = vset.pattern.permute.xlu0 1
    %571 = vperm.xlu0 %570, %v556
    %v572 = vpop.permute.xlu0 %571
    %v574 = vmul.f32 %v572, %v209
    %v575 = vmul.f32 %v572, %v213
    %v576 = vmul.f32 %v572, %v217
    %v577 = vmul.f32 %v572, %v221
    %v578 = vadd.f32 %v566, %v574
    %v579 = vadd.f32 %v567, %v575
    %v580 = vadd.f32 %v568, %v576
    %v581 = vadd.f32 %v569, %v577
    %v582 = vpack.c.bf16 %v554, %v554
    %583 = vmatprep.subr.bf16.mxu0 %v410
    %584 = vmatpush1.bf16.msra.mxu0 %v409
    %585 = vmatprep.subr.bf16.mxu0 %v406
    %586 = vmatpush1.bf16.msra.mxu0 %v405
    %587 = vmatprep.subr.bf16.mxu0 %v402
    %588 = vmatpush1.bf16.msra.mxu0 %v401
    %589 = vmatprep.subr.bf16.mxu0 %v398
    %590 = vmatpush1.bf16.msra.mxu0 %v397
    %591 = vmatprep.subr.bf16.mxu0 %v394
    %592 = vmatpush1.bf16.msra.mxu0 %v393
    %593 = vmatprep.subr.bf16.mxu0 %v390
    %594 = vmatpush1.bf16.msra.mxu0 %v389
    %595 = vmatprep.subr.bf16.mxu0 %v386
    %596 = vmatpush1.bf16.msra.mxu0 %v385
    %597 = vmatprep.subr.bf16.mxu0 %v382
    %598 = vmatpush1.bf16.msra.mxu0 %v381
    %599 = vmatprep.subr.bf16.mxu0 0
    %600 = vmatpush2.bf16.msra.mxu0 0
    %601 = vmatprep.subr.bf16.mxu0 0
    %602 = vmatpush2.bf16.msra.mxu0 0
    %603 = vmatprep.subr.bf16.mxu0 0
    %604 = vmatpush2.bf16.msra.mxu0 0
    %605 = vmatprep.subr.bf16.mxu0 0
    %606 = vmatpush2.bf16.msra.mxu0 0
    %607 = vmatprep.subr.bf16.mxu0 0
    %608 = vmatpush2.bf16.msra.mxu0 0
    %609 = vmatprep.subr.bf16.mxu0 0
    %610 = vmatpush2.bf16.msra.mxu0 0
    %611 = vmatprep.subr.bf16.mxu0 0
    %612 = vmatpush2.bf16.msra.mxu0 0
    %613 = vmatprep.subr.bf16.mxu0 0
    %614 = vmatpush2.bf16.msra.mxu0 0
    %615 = vmatprep.mubr.bf16.mxu0 0
    %616 = vmatmul.mubr.bf16.gmra.mxu0 %v582
    %v617 = vpop.f32.mrf.mxu0
    %v618 = vadd.f32 0.0, %v617
    %v619 = vpop.f32.mrf.mxu0
    %v620 = vadd.f32 0.0, %v619
    %v621 = vpop.f32.mrf.mxu0
    %v622 = vpop.f32.mrf.mxu0
    %623 = vdwg.mxu0
    %624 = vmatprep.subr.bf16.mxu0 %v412
    %625 = vmatpush1.bf16.msra.mxu0 %v411
    %626 = vmatprep.subr.bf16.mxu0 %v408
    %627 = vmatpush1.bf16.msra.mxu0 %v407
    %628 = vmatprep.subr.bf16.mxu0 %v404
    %629 = vmatpush1.bf16.msra.mxu0 %v403
    %630 = vmatprep.subr.bf16.mxu0 %v400
    %631 = vmatpush1.bf16.msra.mxu0 %v399
    %632 = vmatprep.subr.bf16.mxu0 %v396
    %633 = vmatpush1.bf16.msra.mxu0 %v395
    %634 = vmatprep.subr.bf16.mxu0 %v392
    %635 = vmatpush1.bf16.msra.mxu0 %v391
    %636 = vmatprep.subr.bf16.mxu0 %v388
    %637 = vmatpush1.bf16.msra.mxu0 %v387
    %638 = vmatprep.subr.bf16.mxu0 %v384
    %639 = vmatpush1.bf16.msra.mxu0 %v383
    %640 = vmatprep.subr.bf16.mxu0 0
    %641 = vmatpush2.bf16.msra.mxu0 0
    %642 = vmatprep.subr.bf16.mxu0 0
    %643 = vmatpush2.bf16.msra.mxu0 0
    %644 = vmatprep.subr.bf16.mxu0 0
    %645 = vmatpush2.bf16.msra.mxu0 0
    %646 = vmatprep.subr.bf16.mxu0 0
    %647 = vmatpush2.bf16.msra.mxu0 0
    %648 = vmatprep.subr.bf16.mxu0 0
    %649 = vmatpush2.bf16.msra.mxu0 0
    %650 = vmatprep.subr.bf16.mxu0 0
    %651 = vmatpush2.bf16.msra.mxu0 0
    %652 = vmatprep.subr.bf16.mxu0 0
    %653 = vmatpush2.bf16.msra.mxu0 0
    %654 = vmatprep.subr.bf16.mxu0 0
    %655 = vmatpush2.bf16.msra.mxu0 0
    %656 = vmatprep.mubr.bf16.mxu0 0
    %657 = vmatmul.mubr.bf16.gmra.mxu0 %v582
    %v658 = vpop.f32.mrf.mxu0
    %v659 = vadd.f32 0.0, %v658
    %v660 = vpop.f32.mrf.mxu0
    %v661 = vadd.f32 0.0, %v660
    %v662 = vpop.f32.mrf.mxu0
    %v663 = vpop.f32.mrf.mxu0
    %664 = vdwg.mxu0
    %v665 = vadd.f32 %v578, %v618
    %v666 = vadd.f32 %v579, %v620
    %v667 = vadd.f32 %v580, %v659
    %v668 = vadd.f32 %v581, %v661
    %v669 = vxor.u32 %v665, 2147483648
    %v670 = vmul.f32 %v669, 1.442695
    %v671 = vpow.pop %v670
    %v672 = vadd.f32 %v671, 1.0
    %v673 = vrcp.pop %v672
    %v674 = vmul.f32 1.0, %v673
    %v675 = vxor.u32 %v666, 2147483648
    %v676 = vmul.f32 %v675, 1.442695
    %v677 = vpow.pop %v676
    %v678 = vadd.f32 %v677, 1.0
    %v679 = vrcp.pop %v678
    %v680 = vmul.f32 1.0, %v679
    %v681 = vtanh.pop %v667
    %v682 = vxor.u32 %v668, 2147483648
    %v683 = vmul.f32 %v682, 1.442695
    %v684 = vpow.pop %v683
    %v685 = vadd.f32 %v684, 1.0
    %v686 = vrcp.pop %v685
    %v687 = vmul.f32 1.0, %v686
    %v688 = vmul.f32 %v680, %v552
    %v689 = vmul.f32 %v674, %v681
    %v690 = vadd.f32 %v688, %v689
    %v691 = vtanh.pop %v690
    %v692 = vmul.f32 %v687, %v691
    %s693 = scalar_lea.vmem %s0, 16
    %v694 = vld [vmem:[%s693] sm:$0xff]
    %696 = vset.pattern.permute.xlu0 0
    %697 = vperm.xlu0 %696, %v694
    %v698 = vpop.permute.xlu0 %697
    %v700 = vmul.f32 %v698, %v186
    %v701 = vmul.f32 %v698, %v190
    %v702 = vmul.f32 %v698, %v194
    %v703 = vmul.f32 %v698, %v198
    %v704 = vadd.f32 %v164, %v700
    %v705 = vadd.f32 %v168, %v701
    %v706 = vadd.f32 %v172, %v702
    %v707 = vadd.f32 %v176, %v703
    %708 = vset.pattern.permute.xlu0 1
    %709 = vperm.xlu0 %708, %v694
    %v710 = vpop.permute.xlu0 %709
    %v712 = vmul.f32 %v710, %v209
    %v713 = vmul.f32 %v710, %v213
    %v714 = vmul.f32 %v710, %v217
    %v715 = vmul.f32 %v710, %v221
    %v716 = vadd.f32 %v704, %v712
    %v717 = vadd.f32 %v705, %v713
    %v718 = vadd.f32 %v706, %v714
    %v719 = vadd.f32 %v707, %v715
    %v720 = vpack.c.bf16 %v692, %v692
    %721 = vmatprep.subr.bf16.mxu0 %v410
    %722 = vmatpush1.bf16.msra.mxu0 %v409
    %723 = vmatprep.subr.bf16.mxu0 %v406
    %724 = vmatpush1.bf16.msra.mxu0 %v405
    %725 = vmatprep.subr.bf16.mxu0 %v402
    %726 = vmatpush1.bf16.msra.mxu0 %v401
    %727 = vmatprep.subr.bf16.mxu0 %v398
    %728 = vmatpush1.bf16.msra.mxu0 %v397
    %729 = vmatprep.subr.bf16.mxu0 %v394
    %730 = vmatpush1.bf16.msra.mxu0 %v393
    %731 = vmatprep.subr.bf16.mxu0 %v390
    %732 = vmatpush1.bf16.msra.mxu0 %v389
    %733 = vmatprep.subr.bf16.mxu0 %v386
    %734 = vmatpush1.bf16.msra.mxu0 %v385
    %735 = vmatprep.subr.bf16.mxu0 %v382
    %736 = vmatpush1.bf16.msra.mxu0 %v381
    %737 = vmatprep.subr.bf16.mxu0 0
    %738 = vmatpush2.bf16.msra.mxu0 0
    %739 = vmatprep.subr.bf16.mxu0 0
    %740 = vmatpush2.bf16.msra.mxu0 0
    %741 = vmatprep.subr.bf16.mxu0 0
    %742 = vmatpush2.bf16.msra.mxu0 0
    %743 = vmatprep.subr.bf16.mxu0 0
    %744 = vmatpush2.bf16.msra.mxu0 0
    %745 = vmatprep.subr.bf16.mxu0 0
    %746 = vmatpush2.bf16.msra.mxu0 0
    %747 = vmatprep.subr.bf16.mxu0 0
    %748 = vmatpush2.bf16.msra.mxu0 0
    %749 = vmatprep.subr.bf16.mxu0 0
    %750 = vmatpush2.bf16.msra.mxu0 0
    %751 = vmatprep.subr.bf16.mxu0 0
    %752 = vmatpush2.bf16.msra.mxu0 0
    %753 = vmatprep.mubr.bf16.mxu0 0
    %754 = vmatmul.mubr.bf16.gmra.mxu0 %v720
    %v755 = vpop.f32.mrf.mxu0
    %v756 = vadd.f32 0.0, %v755
    %v757 = vpop.f32.mrf.mxu0
    %v758 = vadd.f32 0.0, %v757
    %v759 = vpop.f32.mrf.mxu0
    %v760 = vpop.f32.mrf.mxu0
    %761 = vdwg.mxu0
    %762 = vmatprep.subr.bf16.mxu0 %v412
    %763 = vmatpush1.bf16.msra.mxu0 %v411
    %764 = vmatprep.subr.bf16.mxu0 %v408
    %765 = vmatpush1.bf16.msra.mxu0 %v407
    %766 = vmatprep.subr.bf16.mxu0 %v404
    %767 = vmatpush1.bf16.msra.mxu0 %v403
    %768 = vmatprep.subr.bf16.mxu0 %v400
    %769 = vmatpush1.bf16.msra.mxu0 %v399
    %770 = vmatprep.subr.bf16.mxu0 %v396
    %771 = vmatpush1.bf16.msra.mxu0 %v395
    %772 = vmatprep.subr.bf16.mxu0 %v392
    %773 = vmatpush1.bf16.msra.mxu0 %v391
    %774 = vmatprep.subr.bf16.mxu0 %v388
    %775 = vmatpush1.bf16.msra.mxu0 %v387
    %776 = vmatprep.subr.bf16.mxu0 %v384
    %777 = vmatpush1.bf16.msra.mxu0 %v383
    %778 = vmatprep.subr.bf16.mxu0 0
    %779 = vmatpush2.bf16.msra.mxu0 0
    %780 = vmatprep.subr.bf16.mxu0 0
    %781 = vmatpush2.bf16.msra.mxu0 0
    %782 = vmatprep.subr.bf16.mxu0 0
    %783 = vmatpush2.bf16.msra.mxu0 0
    %784 = vmatprep.subr.bf16.mxu0 0
    %785 = vmatpush2.bf16.msra.mxu0 0
    %786 = vmatprep.subr.bf16.mxu0 0
    %787 = vmatpush2.bf16.msra.mxu0 0
    %788 = vmatprep.subr.bf16.mxu0 0
    %789 = vmatpush2.bf16.msra.mxu0 0
    %790 = vmatprep.subr.bf16.mxu0 0
    %791 = vmatpush2.bf16.msra.mxu0 0
    %792 = vmatprep.subr.bf16.mxu0 0
    %793 = vmatpush2.bf16.msra.mxu0 0
    %794 = vmatprep.mubr.bf16.mxu0 0
    %795 = vmatmul.mubr.bf16.gmra.mxu0 %v720
    %v796 = vpop.f32.mrf.mxu0
    %v797 = vadd.f32 0.0, %v796
    %v798 = vpop.f32.mrf.mxu0
    %v799 = vadd.f32 0.0, %v798
    %v800 = vpop.f32.mrf.mxu0
    %v801 = vpop.f32.mrf.mxu0
    %802 = vdwg.mxu0
    %v803 = vadd.f32 %v716, %v756
    %v804 = vadd.f32 %v717, %v758
    %v805 = vadd.f32 %v718, %v797
    %v806 = vadd.f32 %v719, %v799
    %v807 = vxor.u32 %v803, 2147483648
    %v808 = vmul.f32 %v807, 1.442695
    %v809 = vpow.pop %v808
    %v810 = vadd.f32 %v809, 1.0
    %v811 = vrcp.pop %v810
    %v812 = vmul.f32 1.0, %v811
    %v813 = vxor.u32 %v804, 2147483648
    %v814 = vmul.f32 %v813, 1.442695
    %v815 = vpow.pop %v814
    %v816 = vadd.f32 %v815, 1.0
    %v817 = vrcp.pop %v816
    %v818 = vmul.f32 1.0, %v817
    %v819 = vtanh.pop %v805
    %v820 = vxor.u32 %v806, 2147483648
    %v821 = vmul.f32 %v820, 1.442695
    %v822 = vpow.pop %v821
    %v823 = vadd.f32 %v822, 1.0
    %v824 = vrcp.pop %v823
    %v825 = vmul.f32 1.0, %v824
    %v826 = vmul.f32 %v818, %v690
    %v827 = vmul.f32 %v812, %v819
    %v828 = vadd.f32 %v826, %v827
    %v829 = vtanh.pop %v828
    %v830 = vmul.f32 %v825, %v829
    %s831 = scalar_lea.vmem %s0, 24
    %v832 = vld [vmem:[%s831] sm:$0xff]
    %834 = vset.pattern.permute.xlu0 0
    %835 = vperm.xlu0 %834, %v832
    %v836 = vpop.permute.xlu0 %835
    %v838 = vmul.f32 %v836, %v186
    %v839 = vmul.f32 %v836, %v190
    %v840 = vmul.f32 %v836, %v194
    %v841 = vmul.f32 %v836, %v198
    %v842 = vadd.f32 %v164, %v838
    %v843 = vadd.f32 %v168, %v839
    %v844 = vadd.f32 %v172, %v840
    %v845 = vadd.f32 %v176, %v841
    %846 = vset.pattern.permute.xlu0 1
    %847 = vperm.xlu0 %846, %v832
    %v848 = vpop.permute.xlu0 %847
    %v850 = vmul.f32 %v848, %v209
    %v851 = vmul.f32 %v848, %v213
    %v852 = vmul.f32 %v848, %v217
    %v853 = vmul.f32 %v848, %v221
    %v854 = vadd.f32 %v842, %v850
    %v855 = vadd.f32 %v843, %v851
    %v856 = vadd.f32 %v844, %v852
    %v857 = vadd.f32 %v845, %v853
    %v858 = vpack.c.bf16 %v830, %v830
    %859 = vmatprep.subr.bf16.mxu0 %v410
    %860 = vmatpush1.bf16.msra.mxu0 %v409
    %861 = vmatprep.subr.bf16.mxu0 %v406
    %862 = vmatpush1.bf16.msra.mxu0 %v405
    %863 = vmatprep.subr.bf16.mxu0 %v402
    %864 = vmatpush1.bf16.msra.mxu0 %v401
    %865 = vmatprep.subr.bf16.mxu0 %v398
    %866 = vmatpush1.bf16.msra.mxu0 %v397
    %867 = vmatprep.subr.bf16.mxu0 %v394
    %868 = vmatpush1.bf16.msra.mxu0 %v393
    %869 = vmatprep.subr.bf16.mxu0 %v390
    %870 = vmatpush1.bf16.msra.mxu0 %v389
    %871 = vmatprep.subr.bf16.mxu0 %v386
    %872 = vmatpush1.bf16.msra.mxu0 %v385
    %873 = vmatprep.subr.bf16.mxu0 %v382
    %874 = vmatpush1.bf16.msra.mxu0 %v381
    %875 = vmatprep.subr.bf16.mxu0 0
    %876 = vmatpush2.bf16.msra.mxu0 0
    %877 = vmatprep.subr.bf16.mxu0 0
    %878 = vmatpush2.bf16.msra.mxu0 0
    %879 = vmatprep.subr.bf16.mxu0 0
    %880 = vmatpush2.bf16.msra.mxu0 0
    %881 = vmatprep.subr.bf16.mxu0 0
    %882 = vmatpush2.bf16.msra.mxu0 0
    %883 = vmatprep.subr.bf16.mxu0 0
    %884 = vmatpush2.bf16.msra.mxu0 0
    %885 = vmatprep.subr.bf16.mxu0 0
    %886 = vmatpush2.bf16.msra.mxu0 0
    %887 = vmatprep.subr.bf16.mxu0 0
    %888 = vmatpush2.bf16.msra.mxu0 0
    %889 = vmatprep.subr.bf16.mxu0 0
    %890 = vmatpush2.bf16.msra.mxu0 0
    %891 = vmatprep.mubr.bf16.mxu0 0
    %892 = vmatmul.mubr.bf16.gmra.mxu0 %v858
    %v893 = vpop.f32.mrf.mxu0
    %v894 = vadd.f32 0.0, %v893
    %v895 = vpop.f32.mrf.mxu0
    %v896 = vadd.f32 0.0, %v895
    %v897 = vpop.f32.mrf.mxu0
    %v898 = vpop.f32.mrf.mxu0
    %899 = vdwg.mxu0
    %900 = vmatprep.subr.bf16.mxu0 %v412
    %901 = vmatpush1.bf16.msra.mxu0 %v411
    %902 = vmatprep.subr.bf16.mxu0 %v408
    %903 = vmatpush1.bf16.msra.mxu0 %v407
    %904 = vmatprep.subr.bf16.mxu0 %v404
    %905 = vmatpush1.bf16.msra.mxu0 %v403
    %906 = vmatprep.subr.bf16.mxu0 %v400
    %907 = vmatpush1.bf16.msra.mxu0 %v399
    %908 = vmatprep.subr.bf16.mxu0 %v396
    %909 = vmatpush1.bf16.msra.mxu0 %v395
    %910 = vmatprep.subr.bf16.mxu0 %v392
    %911 = vmatpush1.bf16.msra.mxu0 %v391
    %912 = vmatprep.subr.bf16.mxu0 %v388
    %913 = vmatpush1.bf16.msra.mxu0 %v387
    %914 = vmatprep.subr.bf16.mxu0 %v384
    %915 = vmatpush1.bf16.msra.mxu0 %v383
    %916 = vmatprep.subr.bf16.mxu0 0
    %917 = vmatpush2.bf16.msra.mxu0 0
    %918 = vmatprep.subr.bf16.mxu0 0
    %919 = vmatpush2.bf16.msra.mxu0 0
    %920 = vmatprep.subr.bf16.mxu0 0
    %921 = vmatpush2.bf16.msra.mxu0 0
    %922 = vmatprep.subr.bf16.mxu0 0
    %923 = vmatpush2.bf16.msra.mxu0 0
    %924 = vmatprep.subr.bf16.mxu0 0
    %925 = vmatpush2.bf16.msra.mxu0 0
    %926 = vmatprep.subr.bf16.mxu0 0
    %927 = vmatpush2.bf16.msra.mxu0 0
    %928 = vmatprep.subr.bf16.mxu0 0
    %929 = vmatpush2.bf16.msra.mxu0 0
    %930 = vmatprep.subr.bf16.mxu0 0
    %931 = vmatpush2.bf16.msra.mxu0 0
    %932 = vmatprep.mubr.bf16.mxu0 0
    %933 = vmatmul.mubr.bf16.gmra.mxu0 %v858
    %v934 = vpop.f32.mrf.mxu0
    %v935 = vadd.f32 0.0, %v934
    %v936 = vpop.f32.mrf.mxu0
    %v937 = vadd.f32 0.0, %v936
    %v938 = vpop.f32.mrf.mxu0
    %v939 = vpop.f32.mrf.mxu0
    %940 = vdwg.mxu0
    %v941 = vadd.f32 %v854, %v894
    %v942 = vadd.f32 %v855, %v896
    %v943 = vadd.f32 %v856, %v935
    %v944 = vadd.f32 %v857, %v937
    %v945 = vxor.u32 %v941, 2147483648
    %v946 = vmul.f32 %v945, 1.442695
    %v947 = vpow.pop %v946
    %v948 = vadd.f32 %v947, 1.0
    %v949 = vrcp.pop %v948
    %v950 = vmul.f32 1.0, %v949
    %v951 = vxor.u32 %v942, 2147483648
    %v952 = vmul.f32 %v951, 1.442695
    %v953 = vpow.pop %v952
    %v954 = vadd.f32 %v953, 1.0
    %v955 = vrcp.pop %v954
    %v956 = vmul.f32 1.0, %v955
    %v957 = vtanh.pop %v943
    %v958 = vxor.u32 %v944, 2147483648
    %v959 = vmul.f32 %v958, 1.442695
    %v960 = vpow.pop %v959
    %v961 = vadd.f32 %v960, 1.0
    %v962 = vrcp.pop %v961
    %v963 = vmul.f32 1.0, %v962
    %v964 = vmul.f32 %v956, %v828
    %v965 = vmul.f32 %v950, %v957
    %v966 = vadd.f32 %v964, %v965
    %v967 = vtanh.pop %v966
    %v968 = vmul.f32 %v963, %v967
    %s969 = scalar_lea.vmem %s0, 32
    %v970 = vld [vmem:[%s969] sm:$0xff]
    %972 = vset.pattern.permute.xlu0 0
    %973 = vperm.xlu0 %972, %v970
    %v974 = vpop.permute.xlu0 %973
    %v976 = vmul.f32 %v974, %v186
    %v977 = vmul.f32 %v974, %v190
    %v978 = vmul.f32 %v974, %v194
    %v979 = vmul.f32 %v974, %v198
    %v980 = vadd.f32 %v164, %v976
    %v981 = vadd.f32 %v168, %v977
    %v982 = vadd.f32 %v172, %v978
    %v983 = vadd.f32 %v176, %v979
    %984 = vset.pattern.permute.xlu0 1
    %985 = vperm.xlu0 %984, %v970
    %v986 = vpop.permute.xlu0 %985
    %v988 = vmul.f32 %v986, %v209
    %v989 = vmul.f32 %v986, %v213
    %v990 = vmul.f32 %v986, %v217
    %v991 = vmul.f32 %v986, %v221
    %v992 = vadd.f32 %v980, %v988
    %v993 = vadd.f32 %v981, %v989
    %v994 = vadd.f32 %v982, %v990
    %v995 = vadd.f32 %v983, %v991
    %v996 = vpack.c.bf16 %v968, %v968
    %997 = vmatprep.subr.bf16.mxu0 %v410
    %998 = vmatpush1.bf16.msra.mxu0 %v409
    %999 = vmatprep.subr.bf16.mxu0 %v406
    %1000 = vmatpush1.bf16.msra.mxu0 %v405
    %1001 = vmatprep.subr.bf16.mxu0 %v402
    %1002 = vmatpush1.bf16.msra.mxu0 %v401
    %1003 = vmatprep.subr.bf16.mxu0 %v398
    %1004 = vmatpush1.bf16.msra.mxu0 %v397
    %1005 = vmatprep.subr.bf16.mxu0 %v394
    %1006 = vmatpush1.bf16.msra.mxu0 %v393
    %1007 = vmatprep.subr.bf16.mxu0 %v390
    %1008 = vmatpush1.bf16.msra.mxu0 %v389
    %1009 = vmatprep.subr.bf16.mxu0 %v386
    %1010 = vmatpush1.bf16.msra.mxu0 %v385
    %1011 = vmatprep.subr.bf16.mxu0 %v382
    %1012 = vmatpush1.bf16.msra.mxu0 %v381
    %1013 = vmatprep.subr.bf16.mxu0 0
    %1014 = vmatpush2.bf16.msra.mxu0 0
    %1015 = vmatprep.subr.bf16.mxu0 0
    %1016 = vmatpush2.bf16.msra.mxu0 0
    %1017 = vmatprep.subr.bf16.mxu0 0
    %1018 = vmatpush2.bf16.msra.mxu0 0
    %1019 = vmatprep.subr.bf16.mxu0 0
    %1020 = vmatpush2.bf16.msra.mxu0 0
    %1021 = vmatprep.subr.bf16.mxu0 0
    %1022 = vmatpush2.bf16.msra.mxu0 0
    %1023 = vmatprep.subr.bf16.mxu0 0
    %1024 = vmatpush2.bf16.msra.mxu0 0
    %1025 = vmatprep.subr.bf16.mxu0 0
    %1026 = vmatpush2.bf16.msra.mxu0 0
    %1027 = vmatprep.subr.bf16.mxu0 0
    %1028 = vmatpush2.bf16.msra.mxu0 0
    %1029 = vmatprep.mubr.bf16.mxu0 0
    %1030 = vmatmul.mubr.bf16.gmra.mxu0 %v996
    %v1031 = vpop.f32.mrf.mxu0
    %v1032 = vadd.f32 0.0, %v1031
    %v1033 = vpop.f32.mrf.mxu0
    %v1034 = vadd.f32 0.0, %v1033
    %v1035 = vpop.f32.mrf.mxu0
    %v1036 = vpop.f32.mrf.mxu0
    %1037 = vdwg.mxu0
    %1038 = vmatprep.subr.bf16.mxu0 %v412
    %1039 = vmatpush1.bf16.msra.mxu0 %v411
    %1040 = vmatprep.subr.bf16.mxu0 %v408
    %1041 = vmatpush1.bf16.msra.mxu0 %v407
    %1042 = vmatprep.subr.bf16.mxu0 %v404
    %1043 = vmatpush1.bf16.msra.mxu0 %v403
    %1044 = vmatprep.subr.bf16.mxu0 %v400
    %1045 = vmatpush1.bf16.msra.mxu0 %v399
    %1046 = vmatprep.subr.bf16.mxu0 %v396
    %1047 = vmatpush1.bf16.msra.mxu0 %v395
    %1048 = vmatprep.subr.bf16.mxu0 %v392
    %1049 = vmatpush1.bf16.msra.mxu0 %v391
    %1050 = vmatprep.subr.bf16.mxu0 %v388
    %1051 = vmatpush1.bf16.msra.mxu0 %v387
    %1052 = vmatprep.subr.bf16.mxu0 %v384
    %1053 = vmatpush1.bf16.msra.mxu0 %v383
    %1054 = vmatprep.subr.bf16.mxu0 0
    %1055 = vmatpush2.bf16.msra.mxu0 0
    %1056 = vmatprep.subr.bf16.mxu0 0
    %1057 = vmatpush2.bf16.msra.mxu0 0
    %1058 = vmatprep.subr.bf16.mxu0 0
    %1059 = vmatpush2.bf16.msra.mxu0 0
    %1060 = vmatprep.subr.bf16.mxu0 0
    %1061 = vmatpush2.bf16.msra.mxu0 0
    %1062 = vmatprep.subr.bf16.mxu0 0
    %1063 = vmatpush2.bf16.msra.mxu0 0
    %1064 = vmatprep.subr.bf16.mxu0 0
    %1065 = vmatpush2.bf16.msra.mxu0 0
    %1066 = vmatprep.subr.bf16.mxu0 0
    %1067 = vmatpush2.bf16.msra.mxu0 0
    %1068 = vmatprep.subr.bf16.mxu0 0
    %1069 = vmatpush2.bf16.msra.mxu0 0
    %1070 = vmatprep.mubr.bf16.mxu0 0
    %1071 = vmatmul.mubr.bf16.gmra.mxu0 %v996
    %v1072 = vpop.f32.mrf.mxu0
    %v1073 = vadd.f32 0.0, %v1072
    %v1074 = vpop.f32.mrf.mxu0
    %v1075 = vadd.f32 0.0, %v1074
    %v1076 = vpop.f32.mrf.mxu0
    %v1077 = vpop.f32.mrf.mxu0
    %1078 = vdwg.mxu0
    %v1079 = vadd.f32 %v992, %v1032
    %v1080 = vadd.f32 %v993, %v1034
    %v1081 = vadd.f32 %v994, %v1073
    %v1082 = vadd.f32 %v995, %v1075
    %v1083 = vxor.u32 %v1079, 2147483648
    %v1084 = vmul.f32 %v1083, 1.442695
    %v1085 = vpow.pop %v1084
    %v1086 = vadd.f32 %v1085, 1.0
    %v1087 = vrcp.pop %v1086
    %v1088 = vmul.f32 1.0, %v1087
    %v1089 = vxor.u32 %v1080, 2147483648
    %v1090 = vmul.f32 %v1089, 1.442695
    %v1091 = vpow.pop %v1090
    %v1092 = vadd.f32 %v1091, 1.0
    %v1093 = vrcp.pop %v1092
    %v1094 = vmul.f32 1.0, %v1093
    %v1095 = vtanh.pop %v1081
    %v1096 = vxor.u32 %v1082, 2147483648
    %v1097 = vmul.f32 %v1096, 1.442695
    %v1098 = vpow.pop %v1097
    %v1099 = vadd.f32 %v1098, 1.0
    %v1100 = vrcp.pop %v1099
    %v1101 = vmul.f32 1.0, %v1100
    %v1102 = vmul.f32 %v1094, %v966
    %v1103 = vmul.f32 %v1088, %v1095
    %v1104 = vadd.f32 %v1102, %v1103
    %v1105 = vtanh.pop %v1104
    %v1106 = vmul.f32 %v1101, %v1105
    %s1107 = scalar_lea.vmem %s0, 40
    %v1108 = vld [vmem:[%s1107] sm:$0xff]
    %1110 = vset.pattern.permute.xlu0 0
    %1111 = vperm.xlu0 %1110, %v1108
    %v1112 = vpop.permute.xlu0 %1111
    %v1114 = vmul.f32 %v1112, %v186
    %v1115 = vmul.f32 %v1112, %v190
    %v1116 = vmul.f32 %v1112, %v194
    %v1117 = vmul.f32 %v1112, %v198
    %v1118 = vadd.f32 %v164, %v1114
    %v1119 = vadd.f32 %v168, %v1115
    %v1120 = vadd.f32 %v172, %v1116
    %v1121 = vadd.f32 %v176, %v1117
    %1122 = vset.pattern.permute.xlu0 1
    %1123 = vperm.xlu0 %1122, %v1108
    %v1124 = vpop.permute.xlu0 %1123
    %v1126 = vmul.f32 %v1124, %v209
    %v1127 = vmul.f32 %v1124, %v213
    %v1128 = vmul.f32 %v1124, %v217
    %v1129 = vmul.f32 %v1124, %v221
    %v1130 = vadd.f32 %v1118, %v1126
    %v1131 = vadd.f32 %v1119, %v1127
    %v1132 = vadd.f32 %v1120, %v1128
    %v1133 = vadd.f32 %v1121, %v1129
    %v1134 = vpack.c.bf16 %v1106, %v1106
    %1135 = vmatprep.subr.bf16.mxu0 %v410
    %1136 = vmatpush1.bf16.msra.mxu0 %v409
    %1137 = vmatprep.subr.bf16.mxu0 %v406
    %1138 = vmatpush1.bf16.msra.mxu0 %v405
    %1139 = vmatprep.subr.bf16.mxu0 %v402
    %1140 = vmatpush1.bf16.msra.mxu0 %v401
    %1141 = vmatprep.subr.bf16.mxu0 %v398
    %1142 = vmatpush1.bf16.msra.mxu0 %v397
    %1143 = vmatprep.subr.bf16.mxu0 %v394
    %1144 = vmatpush1.bf16.msra.mxu0 %v393
    %1145 = vmatprep.subr.bf16.mxu0 %v390
    %1146 = vmatpush1.bf16.msra.mxu0 %v389
    %1147 = vmatprep.subr.bf16.mxu0 %v386
    %1148 = vmatpush1.bf16.msra.mxu0 %v385
    %1149 = vmatprep.subr.bf16.mxu0 %v382
    %1150 = vmatpush1.bf16.msra.mxu0 %v381
    %1151 = vmatprep.subr.bf16.mxu0 0
    %1152 = vmatpush2.bf16.msra.mxu0 0
    %1153 = vmatprep.subr.bf16.mxu0 0
    %1154 = vmatpush2.bf16.msra.mxu0 0
    %1155 = vmatprep.subr.bf16.mxu0 0
    %1156 = vmatpush2.bf16.msra.mxu0 0
    %1157 = vmatprep.subr.bf16.mxu0 0
    %1158 = vmatpush2.bf16.msra.mxu0 0
    %1159 = vmatprep.subr.bf16.mxu0 0
    %1160 = vmatpush2.bf16.msra.mxu0 0
    %1161 = vmatprep.subr.bf16.mxu0 0
    %1162 = vmatpush2.bf16.msra.mxu0 0
    %1163 = vmatprep.subr.bf16.mxu0 0
    %1164 = vmatpush2.bf16.msra.mxu0 0
    %1165 = vmatprep.subr.bf16.mxu0 0
    %1166 = vmatpush2.bf16.msra.mxu0 0
    %1167 = vmatprep.mubr.bf16.mxu0 0
    %1168 = vmatmul.mubr.bf16.gmra.mxu0 %v1134
    %v1169 = vpop.f32.mrf.mxu0
    %v1170 = vadd.f32 0.0, %v1169
    %v1171 = vpop.f32.mrf.mxu0
    %v1172 = vadd.f32 0.0, %v1171
    %v1173 = vpop.f32.mrf.mxu0
    %v1174 = vpop.f32.mrf.mxu0
    %1175 = vdwg.mxu0
    %1176 = vmatprep.subr.bf16.mxu0 %v412
    %1177 = vmatpush1.bf16.msra.mxu0 %v411
    %1178 = vmatprep.subr.bf16.mxu0 %v408
    %1179 = vmatpush1.bf16.msra.mxu0 %v407
    %1180 = vmatprep.subr.bf16.mxu0 %v404
    %1181 = vmatpush1.bf16.msra.mxu0 %v403
    %1182 = vmatprep.subr.bf16.mxu0 %v400
    %1183 = vmatpush1.bf16.msra.mxu0 %v399
    %1184 = vmatprep.subr.bf16.mxu0 %v396
    %1185 = vmatpush1.bf16.msra.mxu0 %v395
    %1186 = vmatprep.subr.bf16.mxu0 %v392
    %1187 = vmatpush1.bf16.msra.mxu0 %v391
    %1188 = vmatprep.subr.bf16.mxu0 %v388
    %1189 = vmatpush1.bf16.msra.mxu0 %v387
    %1190 = vmatprep.subr.bf16.mxu0 %v384
    %1191 = vmatpush1.bf16.msra.mxu0 %v383
    %1192 = vmatprep.subr.bf16.mxu0 0
    %1193 = vmatpush2.bf16.msra.mxu0 0
    %1194 = vmatprep.subr.bf16.mxu0 0
    %1195 = vmatpush2.bf16.msra.mxu0 0
    %1196 = vmatprep.subr.bf16.mxu0 0
    %1197 = vmatpush2.bf16.msra.mxu0 0
    %1198 = vmatprep.subr.bf16.mxu0 0
    %1199 = vmatpush2.bf16.msra.mxu0 0
    %1200 = vmatprep.subr.bf16.mxu0 0
    %1201 = vmatpush2.bf16.msra.mxu0 0
    %1202 = vmatprep.subr.bf16.mxu0 0
    %1203 = vmatpush2.bf16.msra.mxu0 0
    %1204 = vmatprep.subr.bf16.mxu0 0
    %1205 = vmatpush2.bf16.msra.mxu0 0
    %1206 = vmatprep.subr.bf16.mxu0 0
    %1207 = vmatpush2.bf16.msra.mxu0 0
    %1208 = vmatprep.mubr.bf16.mxu0 0
    %1209 = vmatmul.mubr.bf16.gmra.mxu0 %v1134
    %v1210 = vpop.f32.mrf.mxu0
    %v1211 = vadd.f32 0.0, %v1210
    %v1212 = vpop.f32.mrf.mxu0
    %v1213 = vadd.f32 0.0, %v1212
    %v1214 = vpop.f32.mrf.mxu0
    %v1215 = vpop.f32.mrf.mxu0
    %1216 = vdwg.mxu0
    %v1217 = vadd.f32 %v1130, %v1170
    %v1218 = vadd.f32 %v1131, %v1172
    %v1219 = vadd.f32 %v1132, %v1211
    %v1220 = vadd.f32 %v1133, %v1213
    %v1221 = vxor.u32 %v1217, 2147483648
    %v1222 = vmul.f32 %v1221, 1.442695
    %v1223 = vpow.pop %v1222
    %v1224 = vadd.f32 %v1223, 1.0
    %v1225 = vrcp.pop %v1224
    %v1226 = vmul.f32 1.0, %v1225
    %v1227 = vxor.u32 %v1218, 2147483648
    %v1228 = vmul.f32 %v1227, 1.442695
    %v1229 = vpow.pop %v1228
    %v1230 = vadd.f32 %v1229, 1.0
    %v1231 = vrcp.pop %v1230
    %v1232 = vmul.f32 1.0, %v1231
    %v1233 = vtanh.pop %v1219
    %v1234 = vxor.u32 %v1220, 2147483648
    %v1235 = vmul.f32 %v1234, 1.442695
    %v1236 = vpow.pop %v1235
    %v1237 = vadd.f32 %v1236, 1.0
    %v1238 = vrcp.pop %v1237
    %v1239 = vmul.f32 1.0, %v1238
    %v1240 = vmul.f32 %v1232, %v1104
    %v1241 = vmul.f32 %v1226, %v1233
    %v1242 = vadd.f32 %v1240, %v1241
    %v1243 = vtanh.pop %v1242
    %v1244 = vmul.f32 %v1239, %v1243
    %s1245 = scalar_lea.vmem %s0, 48
    %v1246 = vld [vmem:[%s1245] sm:$0xff]
    %1248 = vset.pattern.permute.xlu0 0
    %1249 = vperm.xlu0 %1248, %v1246
    %v1250 = vpop.permute.xlu0 %1249
    %v1252 = vmul.f32 %v1250, %v186
    %v1253 = vmul.f32 %v1250, %v190
    %v1254 = vmul.f32 %v1250, %v194
    %v1255 = vmul.f32 %v1250, %v198
    %v1256 = vadd.f32 %v164, %v1252
    %v1257 = vadd.f32 %v168, %v1253
    %v1258 = vadd.f32 %v172, %v1254
    %v1259 = vadd.f32 %v176, %v1255
    %1260 = vset.pattern.permute.xlu0 1
    %1261 = vperm.xlu0 %1260, %v1246
    %v1262 = vpop.permute.xlu0 %1261
    %v1264 = vmul.f32 %v1262, %v209
    %v1265 = vmul.f32 %v1262, %v213
    %v1266 = vmul.f32 %v1262, %v217
    %v1267 = vmul.f32 %v1262, %v221
    %v1268 = vadd.f32 %v1256, %v1264
    %v1269 = vadd.f32 %v1257, %v1265
    %v1270 = vadd.f32 %v1258, %v1266
    %v1271 = vadd.f32 %v1259, %v1267
    %v1272 = vpack.c.bf16 %v1244, %v1244
    %1273 = vmatprep.subr.bf16.mxu0 %v410
    %1274 = vmatpush1.bf16.msra.mxu0 %v409
    %1275 = vmatprep.subr.bf16.mxu0 %v406
    %1276 = vmatpush1.bf16.msra.mxu0 %v405
    %1277 = vmatprep.subr.bf16.mxu0 %v402
    %1278 = vmatpush1.bf16.msra.mxu0 %v401
    %1279 = vmatprep.subr.bf16.mxu0 %v398
    %1280 = vmatpush1.bf16.msra.mxu0 %v397
    %1281 = vmatprep.subr.bf16.mxu0 %v394
    %1282 = vmatpush1.bf16.msra.mxu0 %v393
    %1283 = vmatprep.subr.bf16.mxu0 %v390
    %1284 = vmatpush1.bf16.msra.mxu0 %v389
    %1285 = vmatprep.subr.bf16.mxu0 %v386
    %1286 = vmatpush1.bf16.msra.mxu0 %v385
    %1287 = vmatprep.subr.bf16.mxu0 %v382
    %1288 = vmatpush1.bf16.msra.mxu0 %v381
    %1289 = vmatprep.subr.bf16.mxu0 0
    %1290 = vmatpush2.bf16.msra.mxu0 0
    %1291 = vmatprep.subr.bf16.mxu0 0
    %1292 = vmatpush2.bf16.msra.mxu0 0
    %1293 = vmatprep.subr.bf16.mxu0 0
    %1294 = vmatpush2.bf16.msra.mxu0 0
    %1295 = vmatprep.subr.bf16.mxu0 0
    %1296 = vmatpush2.bf16.msra.mxu0 0
    %1297 = vmatprep.subr.bf16.mxu0 0
    %1298 = vmatpush2.bf16.msra.mxu0 0
    %1299 = vmatprep.subr.bf16.mxu0 0
    %1300 = vmatpush2.bf16.msra.mxu0 0
    %1301 = vmatprep.subr.bf16.mxu0 0
    %1302 = vmatpush2.bf16.msra.mxu0 0
    %1303 = vmatprep.subr.bf16.mxu0 0
    %1304 = vmatpush2.bf16.msra.mxu0 0
    %1305 = vmatprep.mubr.bf16.mxu0 0
    %1306 = vmatmul.mubr.bf16.gmra.mxu0 %v1272
    %v1307 = vpop.f32.mrf.mxu0
    %v1308 = vadd.f32 0.0, %v1307
    %v1309 = vpop.f32.mrf.mxu0
    %v1310 = vadd.f32 0.0, %v1309
    %v1311 = vpop.f32.mrf.mxu0
    %v1312 = vpop.f32.mrf.mxu0
    %1313 = vdwg.mxu0
    %1314 = vmatprep.subr.bf16.mxu0 %v412
    %1315 = vmatpush1.bf16.msra.mxu0 %v411
    %1316 = vmatprep.subr.bf16.mxu0 %v408
    %1317 = vmatpush1.bf16.msra.mxu0 %v407
    %1318 = vmatprep.subr.bf16.mxu0 %v404
    %1319 = vmatpush1.bf16.msra.mxu0 %v403
    %1320 = vmatprep.subr.bf16.mxu0 %v400
    %1321 = vmatpush1.bf16.msra.mxu0 %v399
    %1322 = vmatprep.subr.bf16.mxu0 %v396
    %1323 = vmatpush1.bf16.msra.mxu0 %v395
    %1324 = vmatprep.subr.bf16.mxu0 %v392
    %1325 = vmatpush1.bf16.msra.mxu0 %v391
    %1326 = vmatprep.subr.bf16.mxu0 %v388
    %1327 = vmatpush1.bf16.msra.mxu0 %v387
    %1328 = vmatprep.subr.bf16.mxu0 %v384
    %1329 = vmatpush1.bf16.msra.mxu0 %v383
    %1330 = vmatprep.subr.bf16.mxu0 0
    %1331 = vmatpush2.bf16.msra.mxu0 0
    %1332 = vmatprep.subr.bf16.mxu0 0
    %1333 = vmatpush2.bf16.msra.mxu0 0
    %1334 = vmatprep.subr.bf16.mxu0 0
    %1335 = vmatpush2.bf16.msra.mxu0 0
    %1336 = vmatprep.subr.bf16.mxu0 0
    %1337 = vmatpush2.bf16.msra.mxu0 0
    %1338 = vmatprep.subr.bf16.mxu0 0
    %1339 = vmatpush2.bf16.msra.mxu0 0
    %1340 = vmatprep.subr.bf16.mxu0 0
    %1341 = vmatpush2.bf16.msra.mxu0 0
    %1342 = vmatprep.subr.bf16.mxu0 0
    %1343 = vmatpush2.bf16.msra.mxu0 0
    %1344 = vmatprep.subr.bf16.mxu0 0
    %1345 = vmatpush2.bf16.msra.mxu0 0
    %1346 = vmatprep.mubr.bf16.mxu0 0
    %1347 = vmatmul.mubr.bf16.gmra.mxu0 %v1272
    %v1348 = vpop.f32.mrf.mxu0
    %v1349 = vadd.f32 0.0, %v1348
    %v1350 = vpop.f32.mrf.mxu0
    %v1351 = vadd.f32 0.0, %v1350
    %v1352 = vpop.f32.mrf.mxu0
    %v1353 = vpop.f32.mrf.mxu0
    %1354 = vdwg.mxu0
    %v1355 = vadd.f32 %v1268, %v1308
    %v1356 = vadd.f32 %v1269, %v1310
    %v1357 = vadd.f32 %v1270, %v1349
    %v1358 = vadd.f32 %v1271, %v1351
    %v1359 = vxor.u32 %v1355, 2147483648
    %v1360 = vmul.f32 %v1359, 1.442695
    %v1361 = vpow.pop %v1360
    %v1362 = vadd.f32 %v1361, 1.0
    %v1363 = vrcp.pop %v1362
    %v1364 = vmul.f32 1.0, %v1363
    %v1365 = vxor.u32 %v1356, 2147483648
    %v1366 = vmul.f32 %v1365, 1.442695
    %v1367 = vpow.pop %v1366
    %v1368 = vadd.f32 %v1367, 1.0
    %v1369 = vrcp.pop %v1368
    %v1370 = vmul.f32 1.0, %v1369
    %v1371 = vtanh.pop %v1357
    %v1372 = vxor.u32 %v1358, 2147483648
    %v1373 = vmul.f32 %v1372, 1.442695
    %v1374 = vpow.pop %v1373
    %v1375 = vadd.f32 %v1374, 1.0
    %v1376 = vrcp.pop %v1375
    %v1377 = vmul.f32 1.0, %v1376
    %v1378 = vmul.f32 %v1370, %v1242
    %v1379 = vmul.f32 %v1364, %v1371
    %v1380 = vadd.f32 %v1378, %v1379
    %v1381 = vtanh.pop %v1380
    %v1382 = vmul.f32 %v1377, %v1381
    %s1383 = scalar_lea.vmem %s0, 56
    %v1384 = vld [vmem:[%s1383] sm:$0xff]
    %1386 = vset.pattern.permute.xlu0 0
    %1387 = vperm.xlu0 %1386, %v1384
    %v1388 = vpop.permute.xlu0 %1387
    %v1390 = vmul.f32 %v1388, %v186
    %v1391 = vmul.f32 %v1388, %v190
    %v1392 = vmul.f32 %v1388, %v194
    %v1393 = vmul.f32 %v1388, %v198
    %v1394 = vadd.f32 %v164, %v1390
    %v1395 = vadd.f32 %v168, %v1391
    %v1396 = vadd.f32 %v172, %v1392
    %v1397 = vadd.f32 %v176, %v1393
    %1398 = vset.pattern.permute.xlu0 1
    %1399 = vperm.xlu0 %1398, %v1384
    %v1400 = vpop.permute.xlu0 %1399
    %v1402 = vmul.f32 %v1400, %v209
    %v1403 = vmul.f32 %v1400, %v213
    %v1404 = vmul.f32 %v1400, %v217
    %v1405 = vmul.f32 %v1400, %v221
    %v1406 = vadd.f32 %v1394, %v1402
    %v1407 = vadd.f32 %v1395, %v1403
    %v1408 = vadd.f32 %v1396, %v1404
    %v1409 = vadd.f32 %v1397, %v1405
    %v1410 = vpack.c.bf16 %v1382, %v1382
    %1411 = vmatprep.subr.bf16.mxu0 %v410
    %1412 = vmatpush1.bf16.msra.mxu0 %v409
    %1413 = vmatprep.subr.bf16.mxu0 %v406
    %1414 = vmatpush1.bf16.msra.mxu0 %v405
    %1415 = vmatprep.subr.bf16.mxu0 %v402
    %1416 = vmatpush1.bf16.msra.mxu0 %v401
    %1417 = vmatprep.subr.bf16.mxu0 %v398
    %1418 = vmatpush1.bf16.msra.mxu0 %v397
    %1419 = vmatprep.subr.bf16.mxu0 %v394
    %1420 = vmatpush1.bf16.msra.mxu0 %v393
    %1421 = vmatprep.subr.bf16.mxu0 %v390
    %1422 = vmatpush1.bf16.msra.mxu0 %v389
    %1423 = vmatprep.subr.bf16.mxu0 %v386
    %1424 = vmatpush1.bf16.msra.mxu0 %v385
    %1425 = vmatprep.subr.bf16.mxu0 %v382
    %1426 = vmatpush1.bf16.msra.mxu0 %v381
    %1427 = vmatprep.subr.bf16.mxu0 0
    %1428 = vmatpush2.bf16.msra.mxu0 0
    %1429 = vmatprep.subr.bf16.mxu0 0
    %1430 = vmatpush2.bf16.msra.mxu0 0
    %1431 = vmatprep.subr.bf16.mxu0 0
    %1432 = vmatpush2.bf16.msra.mxu0 0
    %1433 = vmatprep.subr.bf16.mxu0 0
    %1434 = vmatpush2.bf16.msra.mxu0 0
    %1435 = vmatprep.subr.bf16.mxu0 0
    %1436 = vmatpush2.bf16.msra.mxu0 0
    %1437 = vmatprep.subr.bf16.mxu0 0
    %1438 = vmatpush2.bf16.msra.mxu0 0
    %1439 = vmatprep.subr.bf16.mxu0 0
    %1440 = vmatpush2.bf16.msra.mxu0 0
    %1441 = vmatprep.subr.bf16.mxu0 0
    %1442 = vmatpush2.bf16.msra.mxu0 0
    %1443 = vmatprep.mubr.bf16.mxu0 0
    %1444 = vmatmul.mubr.bf16.gmra.mxu0 %v1410
    %v1445 = vpop.f32.mrf.mxu0
    %v1446 = vadd.f32 0.0, %v1445
    %v1447 = vpop.f32.mrf.mxu0
    %v1448 = vadd.f32 0.0, %v1447
    %v1449 = vpop.f32.mrf.mxu0
    %v1450 = vpop.f32.mrf.mxu0
    %1451 = vdwg.mxu0
    %1452 = vmatprep.subr.bf16.mxu0 %v412
    %1453 = vmatpush1.bf16.msra.mxu0 %v411
    %1454 = vmatprep.subr.bf16.mxu0 %v408
    %1455 = vmatpush1.bf16.msra.mxu0 %v407
    %1456 = vmatprep.subr.bf16.mxu0 %v404
    %1457 = vmatpush1.bf16.msra.mxu0 %v403
    %1458 = vmatprep.subr.bf16.mxu0 %v400
    %1459 = vmatpush1.bf16.msra.mxu0 %v399
    %1460 = vmatprep.subr.bf16.mxu0 %v396
    %1461 = vmatpush1.bf16.msra.mxu0 %v395
    %1462 = vmatprep.subr.bf16.mxu0 %v392
    %1463 = vmatpush1.bf16.msra.mxu0 %v391
    %1464 = vmatprep.subr.bf16.mxu0 %v388
    %1465 = vmatpush1.bf16.msra.mxu0 %v387
    %1466 = vmatprep.subr.bf16.mxu0 %v384
    %1467 = vmatpush1.bf16.msra.mxu0 %v383
    %1468 = vmatprep.subr.bf16.mxu0 0
    %1469 = vmatpush2.bf16.msra.mxu0 0
    %1470 = vmatprep.subr.bf16.mxu0 0
    %1471 = vmatpush2.bf16.msra.mxu0 0
    %1472 = vmatprep.subr.bf16.mxu0 0
    %1473 = vmatpush2.bf16.msra.mxu0 0
    %1474 = vmatprep.subr.bf16.mxu0 0
    %1475 = vmatpush2.bf16.msra.mxu0 0
    %1476 = vmatprep.subr.bf16.mxu0 0
    %1477 = vmatpush2.bf16.msra.mxu0 0
    %1478 = vmatprep.subr.bf16.mxu0 0
    %1479 = vmatpush2.bf16.msra.mxu0 0
    %1480 = vmatprep.subr.bf16.mxu0 0
    %1481 = vmatpush2.bf16.msra.mxu0 0
    %1482 = vmatprep.subr.bf16.mxu0 0
    %1483 = vmatpush2.bf16.msra.mxu0 0
    %1484 = vmatprep.mubr.bf16.mxu0 0
    %1485 = vmatmul.mubr.bf16.gmra.mxu0 %v1410
    %v1486 = vpop.f32.mrf.mxu0
    %v1487 = vadd.f32 0.0, %v1486
    %v1488 = vpop.f32.mrf.mxu0
    %v1489 = vadd.f32 0.0, %v1488
    %v1490 = vpop.f32.mrf.mxu0
    %v1491 = vpop.f32.mrf.mxu0
    %1492 = vdwg.mxu0
    %v1493 = vadd.f32 %v1406, %v1446
    %v1494 = vadd.f32 %v1407, %v1448
    %v1495 = vadd.f32 %v1408, %v1487
    %v1496 = vadd.f32 %v1409, %v1489
    %v1497 = vxor.u32 %v1493, 2147483648
    %v1498 = vmul.f32 %v1497, 1.442695
    %v1499 = vpow.pop %v1498
    %v1500 = vadd.f32 %v1499, 1.0
    %v1501 = vrcp.pop %v1500
    %v1502 = vmul.f32 1.0, %v1501
    %v1503 = vxor.u32 %v1494, 2147483648
    %v1504 = vmul.f32 %v1503, 1.442695
    %v1505 = vpow.pop %v1504
    %v1506 = vadd.f32 %v1505, 1.0
    %v1507 = vrcp.pop %v1506
    %v1508 = vmul.f32 1.0, %v1507
    %v1509 = vtanh.pop %v1495
    %v1510 = vxor.u32 %v1496, 2147483648
    %v1511 = vmul.f32 %v1510, 1.442695
    %v1512 = vpow.pop %v1511
    %v1513 = vadd.f32 %v1512, 1.0
    %v1514 = vrcp.pop %v1513
    %v1515 = vmul.f32 1.0, %v1514
    %v1516 = vmul.f32 %v1508, %v1380
    %v1517 = vmul.f32 %v1502, %v1509
    %v1518 = vadd.f32 %v1516, %v1517
    %v1519 = vtanh.pop %v1518
    %v1520 = vmul.f32 %v1515, %v1519
    %v1521 = vld [vmem:[%s7] sm:$0x1]
    %v1523 = vlaneseq
    %v1524 = vshrl.u32 %v1523, 7
    %v1525 = vsub.s32 0, %v1524
    %v1526 = vrot.slane %v1521, %v1525
    %v1528 = vmul.f32 %v1520, %v1526
    %1529 = vadd.xlane.f32.xlu0 %v1528
    %v1530 = vpop.xlane.xlu0 %1529
    %s1531 = sld [smem:[#allocation2]]
    %v1532 = vstv %s1531
    %v1533 = vadd.f32 %v1530, %v1532
    %v1534 = vxor.u32 %v1533, 2147483648
    %v1535 = vmul.f32 %v1534, 1.442695
    %v1536 = vpow.pop %v1535
    %v1537 = vadd.f32 %v1536, 1.0
    %v1538 = vrcp.pop %v1537
    %v1539 = vmul.f32 1.0, %v1538
    %vm1540 = vcmask 7168
    %1541 = vst.msk [vmem:[%s9] sm:$0xff] %vm1540, %v1539
    // Predicated region
    $region42: #{lstm_model_forward.1} parent=1 // pred_check
      _
    $region43: #{lstm_model_forward.1} parent=1 // pred_check_branch
      %1543 = sbr.rel (0) target = $region45
    $region44: #{lstm_model_forward.1} parent=1 // pred_region
      _
    $region45: #{lstm_model_forward.1} parent=1 // pred_fallthru
      _
    // Predicated region
    $region46: #{lstm_model_forward.1} parent=1 // pred_check
      _
    $region47: #{lstm_model_forward.1} parent=1 // pred_check_branch
      %1545 = sbr.rel (0) target = $region49
    $region48: #{lstm_model_forward.1} parent=1 // pred_region
      _
    $region49: #{lstm_model_forward.1} parent=1 // pred_fallthru
      _
    %1546 = vsyncpa [#allocation4], 1

</llo_original>
